<compile_context>
chip_gen: v7x
topology: tpu7x:2x2x1
jax: 0.10.0
libtpu: 0.0.40
codegen_flags: <defaults>
</compile_context>

<pallas_src>
import functools

import jax
import jax.numpy as jnp
from jax import lax
from jax.experimental import pallas as pl
from jax.experimental.pallas import tpu as pltpu

LAMBDA_1 = 1.0
LAMBDA_2 = 1.0
LAMBDA_3 = 1.0
TEMPERATURE = 2.0
KRC_THRESHOLD = 0.0

# Class-padding value: behaves like -inf for softmax (prob underflows to 0)
# and is strictly below every realistic logit, so padded classes contribute a
# compile-time-constant correction to the Kendall-tau pair counts.
NEG_PAD = -1.0e30
OUT_LANES = 128           # lane-dense packed output (9 lanes used)


def _round_up(x, m):
    return ((x + m - 1) // m) * m


def _sum_last2(x):
    # (TB, TC, TC) -> (TB, 1)
    return jnp.sum(jnp.sum(x, axis=-1), axis=-1, keepdims=True)


def _c2kd_kernel(s_ref, t_ref, ps_ref, pt_ref, lab_ref, out_ref,
                 *, num_classes, class_tile):
    f32 = jnp.float32

    s = s_ref[...].astype(f32)       # logits_student        (TB, CP)
    t = t_ref[...].astype(f32)       # logits_teacher        (TB, CP)
    ps = ps_ref[...].astype(f32)     # logits_proxy_student  (TB, CP)
    pt = pt_ref[...].astype(f32)     # logits_proxy_teacher  (TB, CP)
    labels = lab_ref[...]            # (TB, 1) int32

    TB, CP = s.shape
    C = num_classes
    TC = class_tile
    n_ct = CP // TC                  # number of class tiles (static)
    T = f32(TEMPERATURE)
    inv_T = f32(1.0 / TEMPERATURE)
    T2 = T * T

    # one-hot ground-truth mask (padded classes never match: labels < C)
    col = lax.broadcasted_iota(jnp.int32, (TB, CP), 1)
    onehot = (col == labels).astype(f32)

    def logsumexp(x):
        m = jnp.max(x, axis=-1, keepdims=True)
        return m + jnp.log(jnp.sum(jnp.exp(x - m), axis=-1, keepdims=True))

    # ---------------- cross entropy (per-sample, untempered) ----------------
    ce_s = logsumexp(s) - jnp.sum(s * onehot, axis=-1, keepdims=True)
    ce_pt = logsumexp(pt) - jnp.sum(pt * onehot, axis=-1, keepdims=True)

    # --------- tempered log-softmaxes: computed once, reused twice ----------
    def tempered_stats(x):
        xt = x * inv_T
        ls = xt - logsumexp(xt)
        return ls, jnp.exp(ls)

    ls_s, p_s = tempered_stats(s)
    ls_t, p_t = tempered_stats(t)
    ls_ps, p_ps = tempered_stats(ps)
    ls_pt, p_pt = tempered_stats(pt)

    def kl(ls_student, ls_teacher, p_teacher):
        # per-sample T^2 * KL( softmax(teacher/T) || softmax(student/T) )
        return T2 * jnp.sum(p_teacher * (ls_teacher - ls_student),
                            axis=-1, keepdims=True)

    kl_t_pt = kl(ls_t, ls_pt, p_pt)      # teacher        <- proxy_teacher
    kl_pt_t = kl(ls_pt, ls_t, p_t)       # proxy_teacher  <- teacher
    kl_s_ps = kl(ls_s, ls_ps, p_ps)      # student        <- proxy_student
    kl_ps_s = kl(ls_ps, ls_s, p_s)       # proxy_student  <- student

    # -------- non-target KD (gt class suppressed with -1000, as in ref) -----
    m_ps = ps - 1000.0 * onehot
    m_pt = pt - 1000.0 * onehot
    ls_mps, p_mps = tempered_stats(m_ps)
    ls_mpt, p_mpt = tempered_stats(m_pt)
    nt_s2t = kl(ls_mps, ls_mpt, p_mpt)   # proxy_student -> proxy_teacher
    nt_t2s = kl(ls_mpt, ls_mps, p_mps)   # proxy_teacher -> proxy_student

    # ---------------- Kendall tau-b (proxy_teacher vs proxy_student) --------
    # Blocked over (TC x TC) class-tile pairs; never materializes (TB, CP, CP).
    def pair_stats(pt_j, pt_k, ps_j, ps_k):
        dpt = pt_j[:, :, None] - pt_k[:, None, :]         # (TB, TC, TC)
        dps = ps_j[:, :, None] - ps_k[:, None, :]
        prod = dpt * dps
        concord = (prod > 0.0).astype(f32) - (prod < 0.0).astype(f32)
        cc = _sum_last2(concord)
        tx = _sum_last2((dpt == 0.0).astype(f32))
        ty = _sum_last2((dps == 0.0).astype(f32))
        return cc, tx, ty

    if n_ct == 1:
        cc_sum, tx_sum, ty_sum = pair_stats(pt, pt, ps, ps)
    else:
        def body(idx, carry):
            cc_a, tx_a, ty_a = carry
            j = idx // n_ct
            k = idx % n_ct
            oj = pl.multiple_of(j * TC, TC)
            ok = pl.multiple_of(k * TC, TC)
            pt_j = pt_ref[:, pl.ds(oj, TC)].astype(f32)
            pt_k = pt_ref[:, pl.ds(ok, TC)].astype(f32)
            ps_j = ps_ref[:, pl.ds(oj, TC)].astype(f32)
            ps_k = ps_ref[:, pl.ds(ok, TC)].astype(f32)
            cc, tx, ty = pair_stats(pt_j, pt_k, ps_j, ps_k)
            return cc_a + cc, tx_a + tx, ty_a + ty

        zeros = jnp.zeros((TB, 1), f32)
        cc_sum, tx_sum, ty_sum = lax.fori_loop(
            0, n_ct * n_ct, body, (zeros, zeros, zeros))

    # ordered-pair sums -> unordered pairs; remove diagonal and the
    # (compile-time constant) contributions of the NEG_PAD padded classes:
    #   pad-vs-real pairs are all concordant, pad-vs-pad pairs are all ties.
    P = CP - C
    nd = 0.5 * cc_sum - f32(P * C)
    tie_corr = f32(P * (P - 1) / 2.0)
    tx = 0.5 * (tx_sum - f32(CP)) - tie_corr
    ty = 0.5 * (ty_sum - f32(CP)) - tie_corr
    n0 = f32(C * (C - 1) / 2.0)
    denom = jnp.sqrt(jnp.maximum((n0 - tx) * (n0 - ty), 0.0))
    krc = nd / jnp.maximum(denom, f32(1e-12))   # fully-tied rows -> 0 (excluded)

    # ---------------- pack the nine per-sample scalars lane-densely ---------
    lane = lax.broadcasted_iota(jnp.int32, (TB, OUT_LANES), 1)
    packed = jnp.zeros((TB, OUT_LANES), f32)
    for idx, v in enumerate((ce_s, ce_pt, kl_t_pt, kl_pt_t, kl_s_ps, kl_ps_s,
                             krc, nt_s2t, nt_t2s)):
        packed = jnp.where(lane == idx, v, packed)
    out_ref[...] = packed


def c2kd_loss(logits_student, logits_teacher, logits_proxy_student,
              logits_proxy_teacher, labels):
    B, C = logits_student.shape

    # ---- tiling: keep the (TB, TC, TC) Kendall-tau temporaries small enough
    # ---- for v7x's 64 MiB VMEM while still batching enough rows per step.
    TC = min(256, C)                          # class pair tile
    CP = _round_up(C, TC)                     # padded class count (== C if C<=256)
    pair_bytes = 4 * TC * TC * 4              # ~4 live f32 (1, TC, TC) slabs per row
    tb_budget = max(8, ((8 * 1024 * 1024) // pair_bytes) // 8 * 8)
    TB = max(8, min(256, _round_up(B, 8), tb_budget))
    BP = _round_up(B, TB)
    grid = (BP // TB,)

    def pad_logits(x):
        # keep native dtype; pad classes/rows with NEG_PAD (acts like -inf)
        return jnp.pad(x, ((0, BP - B), (0, CP - C)), constant_values=NEG_PAD)

    s = pad_logits(logits_student)
    t = pad_logits(logits_teacher)
    ps = pad_logits(logits_proxy_student)
    pt = pad_logits(logits_proxy_teacher)
    lab = jnp.pad(labels.astype(jnp.int32).reshape(B, 1), ((0, BP - B), (0, 0)))

    logits_spec = pl.BlockSpec((TB, CP), lambda i: (i, 0))
    lab_spec = pl.BlockSpec((TB, 1), lambda i: (i, 0))
    out_spec = pl.BlockSpec((TB, OUT_LANES), lambda i: (i, 0))

    kernel = functools.partial(_c2kd_kernel, num_classes=C, class_tile=TC)

    packed = pl.pallas_call(
        kernel,
        out_shape=jax.ShapeDtypeStruct((BP, OUT_LANES), jnp.float32),
        grid=grid,
        in_specs=[logits_spec, logits_spec, logits_spec, logits_spec, lab_spec],
        out_specs=out_spec,
        compiler_params=pltpu.CompilerParams(
            dimension_semantics=("parallel",),        # megacore on v7x
            vmem_limit_bytes=48 * 1024 * 1024),
    )(s, t, ps, pt, lab)

    vals = packed[:B]                                 # drop batch padding
    ce_s, ce_pt = vals[:, 0], vals[:, 1]
    kl_t_pt, kl_pt_t = vals[:, 2], vals[:, 3]
    kl_s_ps, kl_ps_s = vals[:, 4], vals[:, 5]
    krc, nt_s2t, nt_t2s = vals[:, 6], vals[:, 7], vals[:, 8]

    # KRC filtering (teacher_mask == student_mask in the reference)
    mask = (krc > KRC_THRESHOLD).astype(jnp.float32)
    cnt = jnp.sum(mask)
    safe = jnp.maximum(cnt, 1.0)
    nt_loss_s2t = jnp.where(cnt > 0, jnp.sum(mask * nt_s2t) / safe, 0.0)
    nt_loss_t2s = jnp.where(cnt > 0, jnp.sum(mask * nt_t2s) / safe, 0.0)

    total = (jnp.mean(ce_s) + jnp.mean(ce_pt)
             + LAMBDA_1 * (jnp.mean(kl_t_pt) + jnp.mean(kl_pt_t))
             + LAMBDA_2 * (jnp.mean(kl_s_ps) + jnp.mean(kl_ps_s))
             + LAMBDA_3 * (nt_loss_s2t + nt_loss_t2s))
    return total


if __name__ == "__main__":
    key = jax.random.PRNGKey(0)
    B, C = 8, 16
    k1, k2, k3, k4, k5 = jax.random.split(key, 5)
    logits_student = jax.random.normal(k1, (B, C), jnp.float32)
    logits_teacher = jax.random.normal(k2, (B, C), jnp.float32)
    logits_proxy_student = jax.random.normal(k3, (B, C), jnp.float32)
    logits_proxy_teacher = jax.random.normal(k4, (B, C), jnp.float32)
    labels = jax.random.randint(k5, (B,), 0, C, jnp.int32)

    loss = jax.jit(c2kd_loss)(logits_student, logits_teacher,
                              logits_proxy_student, logits_proxy_teacher,
                              labels)
    jax.block_until_ready(loss)
    print("KERNEL_OK")
</pallas_src>

<mosaic_0001>
module attributes {stable_mosaic.version = 11 : i64} {
  func.func @_c2kd_kernel(%arg0: i32, %arg1: memref<8x16xf32, #tpu.memory_space<vmem>>, %arg2: memref<8x16xf32, #tpu.memory_space<vmem>>, %arg3: memref<8x16xf32, #tpu.memory_space<vmem>>, %arg4: memref<8x16xf32, #tpu.memory_space<vmem>>, %arg5: memref<8x1xi32, #tpu.memory_space<vmem>>, %arg6: memref<8x128xf32, #tpu.memory_space<vmem>>) attributes {dimension_semantics = [#tpu.dimension_semantics<parallel>], iteration_bounds = array<i64: 1>, scalar_prefetch = 0 : i64, scratch_operands = 0 : i64, tpu.core_type = #tpu.core_type<tc>, window_params = [{transform_indices = @transform_0, window_bounds = array<i64: 8, 16>}, {transform_indices = @transform_1, window_bounds = array<i64: 8, 16>}, {transform_indices = @transform_2, window_bounds = array<i64: 8, 16>}, {transform_indices = @transform_3, window_bounds = array<i64: 8, 16>}, {transform_indices = @transform_4, window_bounds = array<i64: 8, 1>}, {transform_indices = @transform_5, window_bounds = array<i64: 8, 128>}]} {
    %c0 = arith.constant 0 : index
    %c0_0 = arith.constant 0 : index
    %0 = vector.load %arg1[%c0, %c0_0] : memref<8x16xf32, #tpu.memory_space<vmem>>, vector<8x16xf32>
    %c0_1 = arith.constant 0 : index
    %c0_2 = arith.constant 0 : index
    %1 = vector.load %arg2[%c0_1, %c0_2] : memref<8x16xf32, #tpu.memory_space<vmem>>, vector<8x16xf32>
    %c0_3 = arith.constant 0 : index
    %c0_4 = arith.constant 0 : index
    %2 = vector.load %arg3[%c0_3, %c0_4] : memref<8x16xf32, #tpu.memory_space<vmem>>, vector<8x16xf32>
    %c0_5 = arith.constant 0 : index
    %c0_6 = arith.constant 0 : index
    %3 = vector.load %arg4[%c0_5, %c0_6] : memref<8x16xf32, #tpu.memory_space<vmem>>, vector<8x16xf32>
    %c0_7 = arith.constant 0 : index
    %c0_8 = arith.constant 0 : index
    %4 = vector.load %arg5[%c0_7, %c0_8] : memref<8x1xi32, #tpu.memory_space<vmem>>, vector<8x1xi32>
    %cst = arith.constant 2.000000e+00 : f32
    %cst_9 = arith.constant 2.000000e+00 : f32
    %5 = arith.mulf %cst, %cst_9 : f32
    %6 = tpu.iota {dimensions = array<i32: 1>} : vector<8x16xi32>
    %7 = vector.broadcast %4 : vector<8x1xi32> to vector<8x16xi32>
    %8 = arith.cmpi eq, %6, %7 : vector<8x16xi32>
    %9 = arith.extui %8 : vector<8x16xi1> to vector<8x16xi32>
    %10 = arith.sitofp %9 : vector<8x16xi32> to vector<8x16xf32>
    %cst_10 = arith.constant dense<0xFF800000> : vector<8xf32>
    %11 = vector.multi_reduction <maximumf>, %0, %cst_10 [1] : vector<8x16xf32> to vector<8xf32>
    %12 = vector.shape_cast %11 : vector<8xf32> to vector<8x1xf32>
    %13 = vector.broadcast %12 : vector<8x1xf32> to vector<8x16xf32>
    %14 = arith.subf %0, %13 : vector<8x16xf32>
    %15 = math.exp %14 : vector<8x16xf32>
    %cst_11 = arith.constant dense<0.000000e+00> : vector<8xf32>
    %16 = vector.multi_reduction <add>, %15, %cst_11 [1] : vector<8x16xf32> to vector<8xf32>
    %17 = vector.shape_cast %16 : vector<8xf32> to vector<8x1xf32>
    %18 = math.log %17 : vector<8x1xf32>
    %19 = arith.addf %12, %18 : vector<8x1xf32>
    %20 = arith.mulf %0, %10 : vector<8x16xf32>
    %cst_12 = arith.constant dense<0.000000e+00> : vector<8xf32>
    %21 = vector.multi_reduction <add>, %20, %cst_12 [1] : vector<8x16xf32> to vector<8xf32>
    %22 = vector.shape_cast %21 : vector<8xf32> to vector<8x1xf32>
    %23 = arith.subf %19, %22 : vector<8x1xf32>
    %cst_13 = arith.constant dense<0xFF800000> : vector<8xf32>
    %24 = vector.multi_reduction <maximumf>, %3, %cst_13 [1] : vector<8x16xf32> to vector<8xf32>
    %25 = vector.shape_cast %24 : vector<8xf32> to vector<8x1xf32>
    %26 = vector.broadcast %25 : vector<8x1xf32> to vector<8x16xf32>
    %27 = arith.subf %3, %26 : vector<8x16xf32>
    %28 = math.exp %27 : vector<8x16xf32>
    %cst_14 = arith.constant dense<0.000000e+00> : vector<8xf32>
    %29 = vector.multi_reduction <add>, %28, %cst_14 [1] : vector<8x16xf32> to vector<8xf32>
    %30 = vector.shape_cast %29 : vector<8xf32> to vector<8x1xf32>
    %31 = math.log %30 : vector<8x1xf32>
    %32 = arith.addf %25, %31 : vector<8x1xf32>
    %33 = arith.mulf %3, %10 : vector<8x16xf32>
    %cst_15 = arith.constant dense<0.000000e+00> : vector<8xf32>
    %34 = vector.multi_reduction <add>, %33, %cst_15 [1] : vector<8x16xf32> to vector<8xf32>
    %35 = vector.shape_cast %34 : vector<8xf32> to vector<8x1xf32>
    %36 = arith.subf %32, %35 : vector<8x1xf32>
    %cst_16 = arith.constant 5.000000e-01 : f32
    %37 = vector.broadcast %cst_16 : f32 to vector<8x16xf32>
    %38 = arith.mulf %0, %37 : vector<8x16xf32>
    %cst_17 = arith.constant dense<0xFF800000> : vector<8xf32>
    %39 = vector.multi_reduction <maximumf>, %38, %cst_17 [1] : vector<8x16xf32> to vector<8xf32>
    %40 = vector.shape_cast %39 : vector<8xf32> to vector<8x1xf32>
    %41 = vector.broadcast %40 : vector<8x1xf32> to vector<8x16xf32>
    %42 = arith.subf %38, %41 : vector<8x16xf32>
    %43 = math.exp %42 : vector<8x16xf32>
    %cst_18 = arith.constant dense<0.000000e+00> : vector<8xf32>
    %44 = vector.multi_reduction <add>, %43, %cst_18 [1] : vector<8x16xf32> to vector<8xf32>
    %45 = vector.shape_cast %44 : vector<8xf32> to vector<8x1xf32>
    %46 = math.log %45 : vector<8x1xf32>
    %47 = arith.addf %40, %46 : vector<8x1xf32>
    %48 = vector.broadcast %47 : vector<8x1xf32> to vector<8x16xf32>
    %49 = arith.subf %38, %48 : vector<8x16xf32>
    %50 = math.exp %49 : vector<8x16xf32>
    %cst_19 = arith.constant 5.000000e-01 : f32
    %51 = vector.broadcast %cst_19 : f32 to vector<8x16xf32>
    %52 = arith.mulf %1, %51 : vector<8x16xf32>
    %cst_20 = arith.constant dense<0xFF800000> : vector<8xf32>
    %53 = vector.multi_reduction <maximumf>, %52, %cst_20 [1] : vector<8x16xf32> to vector<8xf32>
    %54 = vector.shape_cast %53 : vector<8xf32> to vector<8x1xf32>
    %55 = vector.broadcast %54 : vector<8x1xf32> to vector<8x16xf32>
    %56 = arith.subf %52, %55 : vector<8x16xf32>
    %57 = math.exp %56 : vector<8x16xf32>
    %cst_21 = arith.constant dense<0.000000e+00> : vector<8xf32>
    %58 = vector.multi_reduction <add>, %57, %cst_21 [1] : vector<8x16xf32> to vector<8xf32>
    %59 = vector.shape_cast %58 : vector<8xf32> to vector<8x1xf32>
    %60 = math.log %59 : vector<8x1xf32>
    %61 = arith.addf %54, %60 : vector<8x1xf32>
    %62 = vector.broadcast %61 : vector<8x1xf32> to vector<8x16xf32>
    %63 = arith.subf %52, %62 : vector<8x16xf32>
    %64 = math.exp %63 : vector<8x16xf32>
    %cst_22 = arith.constant 5.000000e-01 : f32
    %65 = vector.broadcast %cst_22 : f32 to vector<8x16xf32>
    %66 = arith.mulf %2, %65 : vector<8x16xf32>
    %cst_23 = arith.constant dense<0xFF800000> : vector<8xf32>
    %67 = vector.multi_reduction <maximumf>, %66, %cst_23 [1] : vector<8x16xf32> to vector<8xf32>
    %68 = vector.shape_cast %67 : vector<8xf32> to vector<8x1xf32>
    %69 = vector.broadcast %68 : vector<8x1xf32> to vector<8x16xf32>
    %70 = arith.subf %66, %69 : vector<8x16xf32>
    %71 = math.exp %70 : vector<8x16xf32>
    %cst_24 = arith.constant dense<0.000000e+00> : vector<8xf32>
    %72 = vector.multi_reduction <add>, %71, %cst_24 [1] : vector<8x16xf32> to vector<8xf32>
    %73 = vector.shape_cast %72 : vector<8xf32> to vector<8x1xf32>
    %74 = math.log %73 : vector<8x1xf32>
    %75 = arith.addf %68, %74 : vector<8x1xf32>
    %76 = vector.broadcast %75 : vector<8x1xf32> to vector<8x16xf32>
    %77 = arith.subf %66, %76 : vector<8x16xf32>
    %78 = math.exp %77 : vector<8x16xf32>
    %cst_25 = arith.constant 5.000000e-01 : f32
    %79 = vector.broadcast %cst_25 : f32 to vector<8x16xf32>
    %80 = arith.mulf %3, %79 : vector<8x16xf32>
    %cst_26 = arith.constant dense<0xFF800000> : vector<8xf32>
    %81 = vector.multi_reduction <maximumf>, %80, %cst_26 [1] : vector<8x16xf32> to vector<8xf32>
    %82 = vector.shape_cast %81 : vector<8xf32> to vector<8x1xf32>
    %83 = vector.broadcast %82 : vector<8x1xf32> to vector<8x16xf32>
    %84 = arith.subf %80, %83 : vector<8x16xf32>
    %85 = math.exp %84 : vector<8x16xf32>
    %cst_27 = arith.constant dense<0.000000e+00> : vector<8xf32>
    %86 = vector.multi_reduction <add>, %85, %cst_27 [1] : vector<8x16xf32> to vector<8xf32>
    %87 = vector.shape_cast %86 : vector<8xf32> to vector<8x1xf32>
    %88 = math.log %87 : vector<8x1xf32>
    %89 = arith.addf %82, %88 : vector<8x1xf32>
    %90 = vector.broadcast %89 : vector<8x1xf32> to vector<8x16xf32>
    %91 = arith.subf %80, %90 : vector<8x16xf32>
    %92 = math.exp %91 : vector<8x16xf32>
    %93 = arith.subf %91, %63 : vector<8x16xf32>
    %94 = arith.mulf %92, %93 : vector<8x16xf32>
    %cst_28 = arith.constant dense<0.000000e+00> : vector<8xf32>
    %95 = vector.multi_reduction <add>, %94, %cst_28 [1] : vector<8x16xf32> to vector<8xf32>
    %96 = vector.shape_cast %95 : vector<8xf32> to vector<8x1xf32>
    %97 = vector.broadcast %5 : f32 to vector<8x1xf32>
    %98 = arith.mulf %97, %96 : vector<8x1xf32>
    %99 = arith.subf %63, %91 : vector<8x16xf32>
    %100 = arith.mulf %64, %99 : vector<8x16xf32>
    %cst_29 = arith.constant dense<0.000000e+00> : vector<8xf32>
    %101 = vector.multi_reduction <add>, %100, %cst_29 [1] : vector<8x16xf32> to vector<8xf32>
    %102 = vector.shape_cast %101 : vector<8xf32> to vector<8x1xf32>
    %103 = vector.broadcast %5 : f32 to vector<8x1xf32>
    %104 = arith.mulf %103, %102 : vector<8x1xf32>
    %105 = arith.subf %77, %49 : vector<8x16xf32>
    %106 = arith.mulf %78, %105 : vector<8x16xf32>
    %cst_30 = arith.constant dense<0.000000e+00> : vector<8xf32>
    %107 = vector.multi_reduction <add>, %106, %cst_30 [1] : vector<8x16xf32> to vector<8xf32>
    %108 = vector.shape_cast %107 : vector<8xf32> to vector<8x1xf32>
    %109 = vector.broadcast %5 : f32 to vector<8x1xf32>
    %110 = arith.mulf %109, %108 : vector<8x1xf32>
    %111 = arith.subf %49, %77 : vector<8x16xf32>
    %112 = arith.mulf %50, %111 : vector<8x16xf32>
    %cst_31 = arith.constant dense<0.000000e+00> : vector<8xf32>
    %113 = vector.multi_reduction <add>, %112, %cst_31 [1] : vector<8x16xf32> to vector<8xf32>
    %114 = vector.shape_cast %113 : vector<8xf32> to vector<8x1xf32>
    %115 = vector.broadcast %5 : f32 to vector<8x1xf32>
    %116 = arith.mulf %115, %114 : vector<8x1xf32>
    %cst_32 = arith.constant 1.000000e+03 : f32
    %117 = vector.broadcast %cst_32 : f32 to vector<8x16xf32>
    %118 = arith.mulf %117, %10 : vector<8x16xf32>
    %119 = arith.subf %2, %118 : vector<8x16xf32>
    %cst_33 = arith.constant 1.000000e+03 : f32
    %120 = vector.broadcast %cst_33 : f32 to vector<8x16xf32>
    %121 = arith.mulf %120, %10 : vector<8x16xf32>
    %122 = arith.subf %3, %121 : vector<8x16xf32>
    %cst_34 = arith.constant 5.000000e-01 : f32
    %123 = vector.broadcast %cst_34 : f32 to vector<8x16xf32>
    %124 = arith.mulf %119, %123 : vector<8x16xf32>
    %cst_35 = arith.constant dense<0xFF800000> : vector<8xf32>
    %125 = vector.multi_reduction <maximumf>, %124, %cst_35 [1] : vector<8x16xf32> to vector<8xf32>
    %126 = vector.shape_cast %125 : vector<8xf32> to vector<8x1xf32>
    %127 = vector.broadcast %126 : vector<8x1xf32> to vector<8x16xf32>
    %128 = arith.subf %124, %127 : vector<8x16xf32>
    %129 = math.exp %128 : vector<8x16xf32>
    %cst_36 = arith.constant dense<0.000000e+00> : vector<8xf32>
    %130 = vector.multi_reduction <add>, %129, %cst_36 [1] : vector<8x16xf32> to vector<8xf32>
    %131 = vector.shape_cast %130 : vector<8xf32> to vector<8x1xf32>
    %132 = math.log %131 : vector<8x1xf32>
    %133 = arith.addf %126, %132 : vector<8x1xf32>
    %134 = vector.broadcast %133 : vector<8x1xf32> to vector<8x16xf32>
    %135 = arith.subf %124, %134 : vector<8x16xf32>
    %136 = math.exp %135 : vector<8x16xf32>
    %cst_37 = arith.constant 5.000000e-01 : f32
    %137 = vector.broadcast %cst_37 : f32 to vector<8x16xf32>
    %138 = arith.mulf %122, %137 : vector<8x16xf32>
    %cst_38 = arith.constant dense<0xFF800000> : vector<8xf32>
    %139 = vector.multi_reduction <maximumf>, %138, %cst_38 [1] : vector<8x16xf32> to vector<8xf32>
    %140 = vector.shape_cast %139 : vector<8xf32> to vector<8x1xf32>
    %141 = vector.broadcast %140 : vector<8x1xf32> to vector<8x16xf32>
    %142 = arith.subf %138, %141 : vector<8x16xf32>
    %143 = math.exp %142 : vector<8x16xf32>
    %cst_39 = arith.constant dense<0.000000e+00> : vector<8xf32>
    %144 = vector.multi_reduction <add>, %143, %cst_39 [1] : vector<8x16xf32> to vector<8xf32>
    %145 = vector.shape_cast %144 : vector<8xf32> to vector<8x1xf32>
    %146 = math.log %145 : vector<8x1xf32>
    %147 = arith.addf %140, %146 : vector<8x1xf32>
    %148 = vector.broadcast %147 : vector<8x1xf32> to vector<8x16xf32>
    %149 = arith.subf %138, %148 : vector<8x16xf32>
    %150 = math.exp %149 : vector<8x16xf32>
    %151 = arith.subf %149, %135 : vector<8x16xf32>
    %152 = arith.mulf %150, %151 : vector<8x16xf32>
    %cst_40 = arith.constant dense<0.000000e+00> : vector<8xf32>
    %153 = vector.multi_reduction <add>, %152, %cst_40 [1] : vector<8x16xf32> to vector<8xf32>
    %154 = vector.shape_cast %153 : vector<8xf32> to vector<8x1xf32>
    %155 = vector.broadcast %5 : f32 to vector<8x1xf32>
    %156 = arith.mulf %155, %154 : vector<8x1xf32>
    %157 = arith.subf %135, %149 : vector<8x16xf32>
    %158 = arith.mulf %136, %157 : vector<8x16xf32>
    %cst_41 = arith.constant dense<0.000000e+00> : vector<8xf32>
    %159 = vector.multi_reduction <add>, %158, %cst_41 [1] : vector<8x16xf32> to vector<8xf32>
    %160 = vector.shape_cast %159 : vector<8xf32> to vector<8x1xf32>
    %161 = vector.broadcast %5 : f32 to vector<8x1xf32>
    %162 = arith.mulf %161, %160 : vector<8x1xf32>
    %163 = vector.shape_cast %3 : vector<8x16xf32> to vector<8x16x1xf32>
    %164 = vector.shape_cast %3 : vector<8x16xf32> to vector<8x1x16xf32>
    %165 = vector.broadcast %163 : vector<8x16x1xf32> to vector<8x16x16xf32>
    %166 = vector.broadcast %164 : vector<8x1x16xf32> to vector<8x16x16xf32>
    %167 = arith.subf %165, %166 : vector<8x16x16xf32>
    %168 = vector.shape_cast %2 : vector<8x16xf32> to vector<8x16x1xf32>
    %169 = vector.shape_cast %2 : vector<8x16xf32> to vector<8x1x16xf32>
    %170 = vector.broadcast %168 : vector<8x16x1xf32> to vector<8x16x16xf32>
    %171 = vector.broadcast %169 : vector<8x1x16xf32> to vector<8x16x16xf32>
    %172 = arith.subf %170, %171 : vector<8x16x16xf32>
    %173 = arith.mulf %167, %172 : vector<8x16x16xf32>
    %cst_42 = arith.constant 0.000000e+00 : f32
    %174 = vector.broadcast %cst_42 : f32 to vector<8x16x16xf32>
    %175 = arith.cmpf ogt, %173, %174 : vector<8x16x16xf32>
    %176 = arith.extui %175 : vector<8x16x16xi1> to vector<8x16x16xi32>
    %177 = arith.sitofp %176 : vector<8x16x16xi32> to vector<8x16x16xf32>
    %cst_43 = arith.constant 0.000000e+00 : f32
    %178 = vector.broadcast %cst_43 : f32 to vector<8x16x16xf32>
    %179 = arith.cmpf olt, %173, %178 : vector<8x16x16xf32>
    %180 = arith.extui %179 : vector<8x16x16xi1> to vector<8x16x16xi32>
    %181 = arith.sitofp %180 : vector<8x16x16xi32> to vector<8x16x16xf32>
    %182 = arith.subf %177, %181 : vector<8x16x16xf32>
    %cst_44 = arith.constant dense<0.000000e+00> : vector<8x16xf32>
    %183 = vector.multi_reduction <add>, %182, %cst_44 [2] : vector<8x16x16xf32> to vector<8x16xf32>
    %cst_45 = arith.constant dense<0.000000e+00> : vector<8xf32>
    %184 = vector.multi_reduction <add>, %183, %cst_45 [1] : vector<8x16xf32> to vector<8xf32>
    %185 = vector.shape_cast %184 : vector<8xf32> to vector<8x1xf32>
    %cst_46 = arith.constant 0.000000e+00 : f32
    %186 = vector.broadcast %cst_46 : f32 to vector<8x16x16xf32>
    %187 = arith.cmpf oeq, %167, %186 : vector<8x16x16xf32>
    %188 = arith.extui %187 : vector<8x16x16xi1> to vector<8x16x16xi32>
    %189 = arith.sitofp %188 : vector<8x16x16xi32> to vector<8x16x16xf32>
    %cst_47 = arith.constant dense<0.000000e+00> : vector<8x16xf32>
    %190 = vector.multi_reduction <add>, %189, %cst_47 [2] : vector<8x16x16xf32> to vector<8x16xf32>
    %cst_48 = arith.constant dense<0.000000e+00> : vector<8xf32>
    %191 = vector.multi_reduction <add>, %190, %cst_48 [1] : vector<8x16xf32> to vector<8xf32>
    %192 = vector.shape_cast %191 : vector<8xf32> to vector<8x1xf32>
    %cst_49 = arith.constant 0.000000e+00 : f32
    %193 = vector.broadcast %cst_49 : f32 to vector<8x16x16xf32>
    %194 = arith.cmpf oeq, %172, %193 : vector<8x16x16xf32>
    %195 = arith.extui %194 : vector<8x16x16xi1> to vector<8x16x16xi32>
    %196 = arith.sitofp %195 : vector<8x16x16xi32> to vector<8x16x16xf32>
    %cst_50 = arith.constant dense<0.000000e+00> : vector<8x16xf32>
    %197 = vector.multi_reduction <add>, %196, %cst_50 [2] : vector<8x16x16xf32> to vector<8x16xf32>
    %cst_51 = arith.constant dense<0.000000e+00> : vector<8xf32>
    %198 = vector.multi_reduction <add>, %197, %cst_51 [1] : vector<8x16xf32> to vector<8xf32>
    %199 = vector.shape_cast %198 : vector<8xf32> to vector<8x1xf32>
    %cst_52 = arith.constant 5.000000e-01 : f32
    %200 = vector.broadcast %cst_52 : f32 to vector<8x1xf32>
    %201 = arith.mulf %200, %185 : vector<8x1xf32>
    %cst_53 = arith.constant 0.000000e+00 : f32
    %202 = vector.broadcast %cst_53 : f32 to vector<8x1xf32>
    %203 = arith.subf %201, %202 : vector<8x1xf32>
    %cst_54 = arith.constant 1.600000e+01 : f32
    %204 = vector.broadcast %cst_54 : f32 to vector<8x1xf32>
    %205 = arith.subf %192, %204 : vector<8x1xf32>
    %cst_55 = arith.constant 5.000000e-01 : f32
    %206 = vector.broadcast %cst_55 : f32 to vector<8x1xf32>
    %207 = arith.mulf %206, %205 : vector<8x1xf32>
    %cst_56 = arith.constant 0.000000e+00 : f32
    %208 = vector.broadcast %cst_56 : f32 to vector<8x1xf32>
    %209 = arith.subf %207, %208 : vector<8x1xf32>
    %cst_57 = arith.constant 1.600000e+01 : f32
    %210 = vector.broadcast %cst_57 : f32 to vector<8x1xf32>
    %211 = arith.subf %199, %210 : vector<8x1xf32>
    %cst_58 = arith.constant 5.000000e-01 : f32
    %212 = vector.broadcast %cst_58 : f32 to vector<8x1xf32>
    %213 = arith.mulf %212, %211 : vector<8x1xf32>
    %cst_59 = arith.constant 0.000000e+00 : f32
    %214 = vector.broadcast %cst_59 : f32 to vector<8x1xf32>
    %215 = arith.subf %213, %214 : vector<8x1xf32>
    %cst_60 = arith.constant 1.200000e+02 : f32
    %216 = vector.broadcast %cst_60 : f32 to vector<8x1xf32>
    %217 = arith.subf %216, %209 : vector<8x1xf32>
    %cst_61 = arith.constant 1.200000e+02 : f32
    %218 = vector.broadcast %cst_61 : f32 to vector<8x1xf32>
    %219 = arith.subf %218, %215 : vector<8x1xf32>
    %220 = arith.mulf %217, %219 : vector<8x1xf32>
    %cst_62 = arith.constant 0.000000e+00 : f32
    %221 = vector.broadcast %cst_62 : f32 to vector<8x1xf32>
    %222 = arith.maximumf %220, %221 : vector<8x1xf32>
    %223 = math.sqrt %222 : vector<8x1xf32>
    %cst_63 = arith.constant 9.99999996E-13 : f32
    %224 = vector.broadcast %cst_63 : f32 to vector<8x1xf32>
    %225 = arith.maximumf %223, %224 : vector<8x1xf32>
    %226 = arith.divf %203, %225 : vector<8x1xf32>
    %227 = tpu.iota {dimensions = array<i32: 1>} : vector<8x128xi32>
    %cst_64 = arith.constant 0.000000e+00 : f32
    %228 = vector.broadcast %cst_64 : f32 to vector<8x128xf32>
    %c0_i32 = arith.constant 0 : i32
    %229 = vector.broadcast %c0_i32 : i32 to vector<8x128xi32>
    %230 = arith.cmpi eq, %227, %229 : vector<8x128xi32>
    %231 = vector.shape_cast %23 : vector<8x1xf32> to vector<8x1xf32>
    %232 = vector.broadcast %231 : vector<8x1xf32> to vector<8x128xf32>
    %233 = arith.select %230, %232, %228 : vector<8x128xi1>, vector<8x128xf32>
    %c1_i32 = arith.constant 1 : i32
    %234 = vector.broadcast %c1_i32 : i32 to vector<8x128xi32>
    %235 = arith.cmpi eq, %227, %234 : vector<8x128xi32>
    %236 = vector.shape_cast %36 : vector<8x1xf32> to vector<8x1xf32>
    %237 = vector.broadcast %236 : vector<8x1xf32> to vector<8x128xf32>
    %238 = arith.select %235, %237, %233 : vector<8x128xi1>, vector<8x128xf32>
    %c2_i32 = arith.constant 2 : i32
    %239 = vector.broadcast %c2_i32 : i32 to vector<8x128xi32>
    %240 = arith.cmpi eq, %227, %239 : vector<8x128xi32>
    %241 = vector.shape_cast %98 : vector<8x1xf32> to vector<8x1xf32>
    %242 = vector.broadcast %241 : vector<8x1xf32> to vector<8x128xf32>
    %243 = arith.select %240, %242, %238 : vector<8x128xi1>, vector<8x128xf32>
    %c3_i32 = arith.constant 3 : i32
    %244 = vector.broadcast %c3_i32 : i32 to vector<8x128xi32>
    %245 = arith.cmpi eq, %227, %244 : vector<8x128xi32>
    %246 = vector.shape_cast %104 : vector<8x1xf32> to vector<8x1xf32>
    %247 = vector.broadcast %246 : vector<8x1xf32> to vector<8x128xf32>
    %248 = arith.select %245, %247, %243 : vector<8x128xi1>, vector<8x128xf32>
    %c4_i32 = arith.constant 4 : i32
    %249 = vector.broadcast %c4_i32 : i32 to vector<8x128xi32>
    %250 = arith.cmpi eq, %227, %249 : vector<8x128xi32>
    %251 = vector.shape_cast %110 : vector<8x1xf32> to vector<8x1xf32>
    %252 = vector.broadcast %251 : vector<8x1xf32> to vector<8x128xf32>
    %253 = arith.select %250, %252, %248 : vector<8x128xi1>, vector<8x128xf32>
    %c5_i32 = arith.constant 5 : i32
    %254 = vector.broadcast %c5_i32 : i32 to vector<8x128xi32>
    %255 = arith.cmpi eq, %227, %254 : vector<8x128xi32>
    %256 = vector.shape_cast %116 : vector<8x1xf32> to vector<8x1xf32>
    %257 = vector.broadcast %256 : vector<8x1xf32> to vector<8x128xf32>
    %258 = arith.select %255, %257, %253 : vector<8x128xi1>, vector<8x128xf32>
    %c6_i32 = arith.constant 6 : i32
    %259 = vector.broadcast %c6_i32 : i32 to vector<8x128xi32>
    %260 = arith.cmpi eq, %227, %259 : vector<8x128xi32>
    %261 = vector.shape_cast %226 : vector<8x1xf32> to vector<8x1xf32>
    %262 = vector.broadcast %261 : vector<8x1xf32> to vector<8x128xf32>
    %263 = arith.select %260, %262, %258 : vector<8x128xi1>, vector<8x128xf32>
    %c7_i32 = arith.constant 7 : i32
    %264 = vector.broadcast %c7_i32 : i32 to vector<8x128xi32>
    %265 = arith.cmpi eq, %227, %264 : vector<8x128xi32>
    %266 = vector.shape_cast %156 : vector<8x1xf32> to vector<8x1xf32>
    %267 = vector.broadcast %266 : vector<8x1xf32> to vector<8x128xf32>
    %268 = arith.select %265, %267, %263 : vector<8x128xi1>, vector<8x128xf32>
    %c8_i32 = arith.constant 8 : i32
    %269 = vector.broadcast %c8_i32 : i32 to vector<8x128xi32>
    %270 = arith.cmpi eq, %227, %269 : vector<8x128xi32>
    %271 = vector.shape_cast %162 : vector<8x1xf32> to vector<8x1xf32>
    %272 = vector.broadcast %271 : vector<8x1xf32> to vector<8x128xf32>
    %273 = arith.select %270, %272, %268 : vector<8x128xi1>, vector<8x128xf32>
    %c0_65 = arith.constant 0 : index
    %c0_66 = arith.constant 0 : index
    %274 = vector.load %arg6[%c0_65, %c0_66] : memref<8x128xf32, #tpu.memory_space<vmem>>, vector<8x128xf32>
    tpu.vector_store %arg6[%c0_65, %c0_66], %273 {strides = array<i32>} : memref<8x128xf32, #tpu.memory_space<vmem>>, vector<8x128xf32>,
    return
  }
  func.func @transform_0(%arg0: i32) -> (i32, i32) {
    %c0_i32 = arith.constant 0 : i32
    %c0_i32_0 = arith.constant 0 : i32
    return %arg0, %c0_i32 : i32, i32
  }
  func.func @transform_1(%arg0: i32) -> (i32, i32) {
    %c0_i32 = arith.constant 0 : i32
    %c0_i32_0 = arith.constant 0 : i32
    return %arg0, %c0_i32 : i32, i32
  }
  func.func @transform_2(%arg0: i32) -> (i32, i32) {
    %c0_i32 = arith.constant 0 : i32
    %c0_i32_0 = arith.constant 0 : i32
    return %arg0, %c0_i32 : i32, i32
  }
  func.func @transform_3(%arg0: i32) -> (i32, i32) {
    %c0_i32 = arith.constant 0 : i32
    %c0_i32_0 = arith.constant 0 : i32
    return %arg0, %c0_i32 : i32, i32
  }
  func.func @transform_4(%arg0: i32) -> (i32, i32) {
    %c0_i32 = arith.constant 0 : i32
    %c0_i32_0 = arith.constant 0 : i32
    return %arg0, %c0_i32 : i32, i32
  }
  func.func @transform_5(%arg0: i32) -> (i32, i32) {
    %c0_i32 = arith.constant 0 : i32
    %c0_i32_0 = arith.constant 0 : i32
    return %arg0, %c0_i32 : i32, i32
  }
}

</mosaic_0001>

<llo_original>
// kernel: c2kd_loss.1
$region0: #{c2kd_loss.1}
  #allocation0 [shape = 'u32[]', space=smem, size = 0x4, offset = 0x4, fixed_abs, tag = 'smem constant byte address 0x4 - core index']
  #allocation1 [shape = 'u32[144,128]{1,0:T(1,128)}', space=vmem, size = 0x12000, scoped, tag = 'internal scratch']
  %s0 = inlined_call_operand.vmem [shape: f32[8,16], index: 0, kind: input, shape index: {}]
  %s1 = inlined_call_operand.vmem [shape: f32[8,16], index: 1, kind: input, shape index: {}]
  %s2 = inlined_call_operand.hbm [shape: f32[8,16], index: 2, kind: input, shape index: {}]
  %s3 = inlined_call_operand.vmem [shape: f32[8,16], index: 3, kind: input, shape index: {}]
  %s4 = inlined_call_operand.vmem [shape: s32[8,1], index: 4, kind: input, shape index: {}]
  %s5 = inlined_call_operand.vmem [shape: f32[8,128], index: 5, kind: output, shape index: {}]
  %s6 = sld [smem:[#allocation0]]
  $region34: #{c2kd_loss.1} parent=0
    _
  %s8 = ssub.s32 1, %s6
  %s9 = scalar_select 0, %s8, %s6
  $region1: #{c2kd_loss.1} parent=0
    #allocation2 [shape = 'u8[4096]{0}', space=vmem, size = 0x1000, scoped, tag = 'input window, operand 2, single buffered']
    #allocation3 [shape = 's32[1]{0}', space=sflag, size = 0x4, scoped, tag = 'scoped memory for c2kd_loss.1']
    %10 = vsyncpa [#allocation3], 0
    // Predicated region
    $region2: #{c2kd_loss.1} parent=1 // pred_check
      _
    $region3: #{c2kd_loss.1} parent=1 // pred_check_branch
      %12 = sbr.rel (0) target = $region5
    $region4: #{c2kd_loss.1} parent=1 // pred_region
      _
    $region5: #{c2kd_loss.1} parent=1 // pred_fallthru
      _
    // Predicated region
    $region6: #{c2kd_loss.1} parent=1 // pred_check
      _
    $region7: #{c2kd_loss.1} parent=1 // pred_check_branch
      %14 = sbr.rel (0) target = $region9
    $region8: #{c2kd_loss.1} parent=1 // pred_region
      _
    $region9: #{c2kd_loss.1} parent=1 // pred_fallthru
      _
    // Predicated region
    $region10: #{c2kd_loss.1} parent=1 // pred_check
      _
    $region11: #{c2kd_loss.1} parent=1 // pred_check_branch
      %16 = sbr.rel (0) target = $region13
    $region12: #{c2kd_loss.1} parent=1 // pred_region
      %s18 = ssub.s32 128, 128
      %19 = vsyncadd [#allocation3], %s18
      %s21 = sshll.u32 [#allocation2], 4
      %s22 = int_to_ptr.vmem [resolvable:$true] %s21
      %24 = dma.hbm_to_vmem [thread:$0]  %s2, 128, %s22, [#allocation3]
    $region13: #{c2kd_loss.1} parent=1 // pred_fallthru
      _
    // Predicated region
    $region14: #{c2kd_loss.1} parent=1 // pred_check
      _
    $region15: #{c2kd_loss.1} parent=1 // pred_check_branch
      %26 = sbr.rel (0) target = $region17
    $region16: #{c2kd_loss.1} parent=1 // pred_region
      _
    $region17: #{c2kd_loss.1} parent=1 // pred_fallthru
      _
    // Predicated region
    $region18: #{c2kd_loss.1} parent=1 // pred_check
      _
    $region19: #{c2kd_loss.1} parent=1 // pred_check_branch
      %28 = sbr.rel (0) target = $region21
    $region20: #{c2kd_loss.1} parent=1 // pred_region
      _
    $region21: #{c2kd_loss.1} parent=1 // pred_fallthru
      _
    // Predicated region
    $region22: #{c2kd_loss.1} parent=1 // pred_check
      _
    $region23: #{c2kd_loss.1} parent=1 // pred_check_branch
      %30 = sbr.rel (0) target = $region25
    $region24: #{c2kd_loss.1} parent=1 // pred_region
      %31 = dma.done [#allocation3], 128
    $region25: #{c2kd_loss.1} parent=1 // pred_fallthru
      _
    %v32 = vld [vmem:[%s0] sm:$0xff]
    %v33 = vld [vmem:[%s1] sm:$0xff]
    %v34 = vld [vmem:[#allocation2] sm:$0xff]
    %v35 = vld [vmem:[%s3] sm:$0xff]
    %v36 = vld [vmem:[%s4] sm:$0xff]
    %v37 = vlaneseq
    %v38 = vand.u32 %v37, 127
    %39 = vset.pattern.permute.xlu0 0
    %40 = vperm.xlu0 %39, %v36
    %v41 = vpop.permute.xlu0 %40
    %vm42 = vcmp.eq.s32.totalorder %v38, %v41
    %v43 = vsel %vm42, 1, 0
    %v44 = vcvt.s32.f32 %v43
    %vm45 = vcmask 130048
    %v46 = vsel %vm45, %v32, -inf
    %47 = vmax.xlane.f32.xlu0 %v46
    %v48 = vpop.xlane.xlu0 %47
    %v49 = vsub.f32 %v32, %v48
    %v50 = vmul.f32 %v49, 1.442695
    %v51 = vpow.pop %v50
    %v52 = vsel %vm45, %v51, 0.0
    %53 = vadd.xlane.f32.xlu0 %v52
    %v54 = vpop.xlane.xlu0 %53
    %v55 = vlog2.pop %v54
    %v56 = vmul.f32 %v55, 0.6931472
    %v57 = vadd.f32 %v48, %v56
    %v58 = vmul.f32 %v32, %v44
    %v59 = vsel %vm45, %v58, 0.0
    %60 = vadd.xlane.f32.xlu0 %v59
    %v61 = vpop.xlane.xlu0 %60
    %v62 = vsub.f32 %v57, %v61
    %v63 = vsel %vm45, %v35, -inf
    %64 = vmax.xlane.f32.xlu0 %v63
    %v65 = vpop.xlane.xlu0 %64
    %v66 = vsub.f32 %v35, %v65
    %v67 = vmul.f32 %v66, 1.442695
    %v68 = vpow.pop %v67
    %v69 = vsel %vm45, %v68, 0.0
    %70 = vadd.xlane.f32.xlu0 %v69
    %v71 = vpop.xlane.xlu0 %70
    %v72 = vlog2.pop %v71
    %v73 = vmul.f32 %v72, 0.6931472
    %v74 = vadd.f32 %v65, %v73
    %v75 = vmul.f32 %v35, %v44
    %v76 = vsel %vm45, %v75, 0.0
    %77 = vadd.xlane.f32.xlu0 %v76
    %v78 = vpop.xlane.xlu0 %77
    %v79 = vsub.f32 %v74, %v78
    %v80 = vmul.f32 %v32, 0.5
    %v81 = vsel %vm45, %v80, -inf
    %82 = vmax.xlane.f32.xlu0 %v81
    %v83 = vpop.xlane.xlu0 %82
    %v84 = vsub.f32 %v80, %v83
    %v85 = vmul.f32 %v84, 1.442695
    %v86 = vpow.pop %v85
    %v87 = vsel %vm45, %v86, 0.0
    %88 = vadd.xlane.f32.xlu0 %v87
    %v89 = vpop.xlane.xlu0 %88
    %v90 = vlog2.pop %v89
    %v91 = vmul.f32 %v90, 0.6931472
    %v92 = vadd.f32 %v83, %v91
    %v93 = vsub.f32 %v80, %v92
    %v94 = vmul.f32 %v93, 1.442695
    %v95 = vpow.pop %v94
    %v96 = vmul.f32 %v33, 0.5
    %v97 = vsel %vm45, %v96, -inf
    %98 = vmax.xlane.f32.xlu0 %v97
    %v99 = vpop.xlane.xlu0 %98
    %v100 = vsub.f32 %v96, %v99
    %v101 = vmul.f32 %v100, 1.442695
    %v102 = vpow.pop %v101
    %v103 = vsel %vm45, %v102, 0.0
    %104 = vadd.xlane.f32.xlu0 %v103
    %v105 = vpop.xlane.xlu0 %104
    %v106 = vlog2.pop %v105
    %v107 = vmul.f32 %v106, 0.6931472
    %v108 = vadd.f32 %v99, %v107
    %v109 = vsub.f32 %v96, %v108
    %v110 = vmul.f32 %v109, 1.442695
    %v111 = vpow.pop %v110
    %v112 = vmul.f32 %v34, 0.5
    %v113 = vsel %vm45, %v112, -inf
    %114 = vmax.xlane.f32.xlu0 %v113
    %v115 = vpop.xlane.xlu0 %114
    %v116 = vsub.f32 %v112, %v115
    %v117 = vmul.f32 %v116, 1.442695
    %v118 = vpow.pop %v117
    %v119 = vsel %vm45, %v118, 0.0
    %120 = vadd.xlane.f32.xlu0 %v119
    %v121 = vpop.xlane.xlu0 %120
    %v122 = vlog2.pop %v121
    %v123 = vmul.f32 %v122, 0.6931472
    %v124 = vadd.f32 %v115, %v123
    %v125 = vsub.f32 %v112, %v124
    %v126 = vmul.f32 %v125, 1.442695
    %v127 = vpow.pop %v126
    %v128 = vmul.f32 %v35, 0.5
    %v129 = vsel %vm45, %v128, -inf
    %130 = vmax.xlane.f32.xlu0 %v129
    %v131 = vpop.xlane.xlu0 %130
    %v132 = vsub.f32 %v128, %v131
    %v133 = vmul.f32 %v132, 1.442695
    %v134 = vpow.pop %v133
    %v135 = vsel %vm45, %v134, 0.0
    %136 = vadd.xlane.f32.xlu0 %v135
    %v137 = vpop.xlane.xlu0 %136
    %v138 = vlog2.pop %v137
    %v139 = vmul.f32 %v138, 0.6931472
    %v140 = vadd.f32 %v131, %v139
    %v141 = vsub.f32 %v128, %v140
    %v142 = vmul.f32 %v141, 1.442695
    %v143 = vpow.pop %v142
    %v144 = vsub.f32 %v141, %v109
    %v145 = vmul.f32 %v143, %v144
    %v146 = vsel %vm45, %v145, 0.0
    %147 = vadd.xlane.f32.xlu0 %v146
    %v148 = vpop.xlane.xlu0 %147
    %v149 = vmul.f32 %v148, 4.0
    %v150 = vsub.f32 %v109, %v141
    %v151 = vmul.f32 %v111, %v150
    %v152 = vsel %vm45, %v151, 0.0
    %153 = vadd.xlane.f32.xlu0 %v152
    %v154 = vpop.xlane.xlu0 %153
    %v155 = vmul.f32 %v154, 4.0
    %v156 = vsub.f32 %v125, %v93
    %v157 = vmul.f32 %v127, %v156
    %v158 = vsel %vm45, %v157, 0.0
    %159 = vadd.xlane.f32.xlu0 %v158
    %v160 = vpop.xlane.xlu0 %159
    %v161 = vmul.f32 %v160, 4.0
    %v162 = vsub.f32 %v93, %v125
    %v163 = vmul.f32 %v95, %v162
    %v164 = vsel %vm45, %v163, 0.0
    %165 = vadd.xlane.f32.xlu0 %v164
    %v166 = vpop.xlane.xlu0 %165
    %v167 = vmul.f32 %v166, 4.0
    %v168 = vmul.f32 %v44, 1000.0
    %v169 = vsub.f32 %v34, %v168
    %v170 = vsub.f32 %v35, %v168
    %v171 = vmul.f32 %v169, 0.5
    %v172 = vsel %vm45, %v171, -inf
    %173 = vmax.xlane.f32.xlu0 %v172
    %v174 = vpop.xlane.xlu0 %173
    %v175 = vsub.f32 %v171, %v174
    %v176 = vmul.f32 %v175, 1.442695
    %v177 = vpow.pop %v176
    %v178 = vsel %vm45, %v177, 0.0
    %179 = vadd.xlane.f32.xlu0 %v178
    %v180 = vpop.xlane.xlu0 %179
    %v181 = vlog2.pop %v180
    %v182 = vmul.f32 %v181, 0.6931472
    %v183 = vadd.f32 %v174, %v182
    %v184 = vsub.f32 %v171, %v183
    %v185 = vmul.f32 %v184, 1.442695
    %v186 = vpow.pop %v185
    %v187 = vmul.f32 %v170, 0.5
    %v188 = vsel %vm45, %v187, -inf
    %189 = vmax.xlane.f32.xlu0 %v188
    %v190 = vpop.xlane.xlu0 %189
    %v191 = vsub.f32 %v187, %v190
    %v192 = vmul.f32 %v191, 1.442695
    %v193 = vpow.pop %v192
    %v194 = vsel %vm45, %v193, 0.0
    %195 = vadd.xlane.f32.xlu0 %v194
    %v196 = vpop.xlane.xlu0 %195
    %v197 = vlog2.pop %v196
    %v198 = vmul.f32 %v197, 0.6931472
    %v199 = vadd.f32 %v190, %v198
    %v200 = vsub.f32 %v187, %v199
    %v201 = vmul.f32 %v200, 1.442695
    %v202 = vpow.pop %v201
    %v203 = vsub.f32 %v200, %v184
    %v204 = vmul.f32 %v202, %v203
    %v205 = vsel %vm45, %v204, 0.0
    %206 = vadd.xlane.f32.xlu0 %v205
    %v207 = vpop.xlane.xlu0 %206
    %v208 = vmul.f32 %v207, 4.0
    %v209 = vsub.f32 %v184, %v200
    %v210 = vmul.f32 %v186, %v209
    %v211 = vsel %vm45, %v210, 0.0
    %212 = vadd.xlane.f32.xlu0 %v211
    %v213 = vpop.xlane.xlu0 %212
    %v214 = vmul.f32 %v213, 4.0
    %v215 = vlaneseq
    %v216 = vshrl.u32 %v215, 7
    %v217 = vsub.s32 0, %v216
    %v218 = vrot.slane %v35, %v217
    %220 = vbcast.lane.b32.xlu0 %v218, 256
    %v221 = vpop.permute.xlu0 %220
    %s223 = sor.u32 256, 8
    %224 = vbcast.lane.b32.xlu0 %v218, %s223
    %v225 = vpop.permute.xlu0 %224
    %v226 = vlaneseq
    %v227 = vshrl.u32 %v226, 7
    %v228 = vsub.s32 1, %v227
    %v229 = vrot.slane %v35, %v228
    %231 = vbcast.lane.b32.xlu0 %v229, 256
    %v232 = vpop.permute.xlu0 %231
    %s234 = sor.u32 256, 8
    %235 = vbcast.lane.b32.xlu0 %v229, %s234
    %v236 = vpop.permute.xlu0 %235
    %v237 = vlaneseq
    %v238 = vshrl.u32 %v237, 7
    %v239 = vsub.s32 2, %v238
    %v240 = vrot.slane %v35, %v239
    %242 = vbcast.lane.b32.xlu0 %v240, 256
    %v243 = vpop.permute.xlu0 %242
    %s245 = sor.u32 256, 8
    %246 = vbcast.lane.b32.xlu0 %v240, %s245
    %v247 = vpop.permute.xlu0 %246
    %v248 = vlaneseq
    %v249 = vshrl.u32 %v248, 7
    %v250 = vsub.s32 3, %v249
    %v251 = vrot.slane %v35, %v250
    %253 = vbcast.lane.b32.xlu0 %v251, 256
    %v254 = vpop.permute.xlu0 %253
    %s256 = sor.u32 256, 8
    %257 = vbcast.lane.b32.xlu0 %v251, %s256
    %v258 = vpop.permute.xlu0 %257
    %v259 = vlaneseq
    %v260 = vshrl.u32 %v259, 7
    %v261 = vsub.s32 4, %v260
    %v262 = vrot.slane %v35, %v261
    %264 = vbcast.lane.b32.xlu0 %v262, 256
    %v265 = vpop.permute.xlu0 %264
    %s267 = sor.u32 256, 8
    %268 = vbcast.lane.b32.xlu0 %v262, %s267
    %v269 = vpop.permute.xlu0 %268
    %v270 = vlaneseq
    %v271 = vshrl.u32 %v270, 7
    %v272 = vsub.s32 5, %v271
    %v273 = vrot.slane %v35, %v272
    %275 = vbcast.lane.b32.xlu0 %v273, 256
    %v276 = vpop.permute.xlu0 %275
    %s278 = sor.u32 256, 8
    %279 = vbcast.lane.b32.xlu0 %v273, %s278
    %v280 = vpop.permute.xlu0 %279
    %v281 = vlaneseq
    %v282 = vshrl.u32 %v281, 7
    %v283 = vsub.s32 6, %v282
    %v284 = vrot.slane %v35, %v283
    %286 = vbcast.lane.b32.xlu0 %v284, 256
    %v287 = vpop.permute.xlu0 %286
    %s289 = sor.u32 256, 8
    %290 = vbcast.lane.b32.xlu0 %v284, %s289
    %v291 = vpop.permute.xlu0 %290
    %v292 = vlaneseq
    %v293 = vshrl.u32 %v292, 7
    %v294 = vsub.s32 7, %v293
    %v295 = vrot.slane %v35, %v294
    %297 = vbcast.lane.b32.xlu0 %v295, 256
    %v298 = vpop.permute.xlu0 %297
    %s300 = sor.u32 256, 8
    %301 = vbcast.lane.b32.xlu0 %v295, %s300
    %v302 = vpop.permute.xlu0 %301
    %v304 = vcombine.high %v35, %v35
    %v306 = vunpack.c.l.s4 1966171168
    %v307 = vunpack.c.0.s8 %v306
    %v308 = vlaneseq
    %v309 = vshrl.u32 %v308, 7
    %v310 = vsub.s32 %v307, %v309
    %v311 = vrot.slane %v35, %v310
    %v313 = vunpack.c.l.s4 1966171168
    %v314 = vunpack.c.0.s8 %v313
    %v315 = vlaneseq
    %v316 = vshrl.u32 %v315, 7
    %v317 = vsub.s32 %v314, %v316
    %v318 = vrot.slane %v304, %v317
    %v319 = vcombine.high %v311, %v311
    %v320 = vcombine.high %v318, %v318
    %v322 = vunpack.c.l.s4 1966171168
    %v323 = vunpack.c.0.s8 %v322
    %v324 = vlaneseq
    %v325 = vshrl.u32 %v324, 7
    %v326 = vsub.s32 %v323, %v325
    %v327 = vrot.slane %v311, %v326
    %v329 = vunpack.c.l.s4 1966171168
    %v330 = vunpack.c.0.s8 %v329
    %v331 = vlaneseq
    %v332 = vshrl.u32 %v331, 7
    %v333 = vsub.s32 %v330, %v332
    %v334 = vrot.slane %v318, %v333
    %v336 = vunpack.c.l.s4 1966171168
    %v337 = vunpack.c.0.s8 %v336
    %v338 = vlaneseq
    %v339 = vshrl.u32 %v338, 7
    %v340 = vsub.s32 %v337, %v339
    %v341 = vrot.slane %v319, %v340
    %v343 = vunpack.c.l.s4 1966171168
    %v344 = vunpack.c.0.s8 %v343
    %v345 = vlaneseq
    %v346 = vshrl.u32 %v345, 7
    %v347 = vsub.s32 %v344, %v346
    %v348 = vrot.slane %v320, %v347
    %v349 = vcombine.high %v327, %v327
    %v350 = vcombine.high %v334, %v334
    %v351 = vcombine.high %v341, %v341
    %v352 = vcombine.high %v348, %v348
    %v353 = vlaneseq
    %v354 = vshrl.u32 %v353, 7
    %v355 = vsub.s32 0, %v354
    %v356 = vrot.slane %v327, %v355
    %v357 = vlaneseq
    %v358 = vshrl.u32 %v357, 7
    %v359 = vsub.s32 0, %v358
    %v360 = vrot.slane %v341, %v359
    %v361 = vlaneseq
    %v362 = vshrl.u32 %v361, 7
    %v363 = vsub.s32 0, %v362
    %v364 = vrot.slane %v349, %v363
    %v365 = vlaneseq
    %v366 = vshrl.u32 %v365, 7
    %v367 = vsub.s32 0, %v366
    %v368 = vrot.slane %v351, %v367
    %v369 = vlaneseq
    %v370 = vshrl.u32 %v369, 7
    %v371 = vsub.s32 0, %v370
    %v372 = vrot.slane %v334, %v371
    %v373 = vlaneseq
    %v374 = vshrl.u32 %v373, 7
    %v375 = vsub.s32 0, %v374
    %v376 = vrot.slane %v348, %v375
    %v377 = vlaneseq
    %v378 = vshrl.u32 %v377, 7
    %v379 = vsub.s32 0, %v378
    %v380 = vrot.slane %v350, %v379
    %v381 = vlaneseq
    %v382 = vshrl.u32 %v381, 7
    %v383 = vsub.s32 0, %v382
    %v384 = vrot.slane %v352, %v383
    %v393 = vsub.f32 %v221, %v356
    %v394 = vsub.f32 %v225, %v356
    %v395 = vsub.f32 %v232, %v360
    %v396 = vsub.f32 %v236, %v360
    %v397 = vsub.f32 %v243, %v364
    %v398 = vsub.f32 %v247, %v364
    %v399 = vsub.f32 %v254, %v368
    %v400 = vsub.f32 %v258, %v368
    %v401 = vsub.f32 %v265, %v372
    %v402 = vsub.f32 %v269, %v372
    %v403 = vsub.f32 %v276, %v376
    %v404 = vsub.f32 %v280, %v376
    %v405 = vsub.f32 %v287, %v380
    %v406 = vsub.f32 %v291, %v380
    %v407 = vsub.f32 %v298, %v384
    %v408 = vsub.f32 %v302, %v384
    %v409 = vlaneseq
    %v410 = vshrl.u32 %v409, 7
    %v411 = vsub.s32 0, %v410
    %v412 = vrot.slane %v34, %v411
    %414 = vbcast.lane.b32.xlu0 %v412, 256
    %v415 = vpop.permute.xlu0 %414
    %s417 = sor.u32 256, 8
    %418 = vbcast.lane.b32.xlu0 %v412, %s417
    %v419 = vpop.permute.xlu0 %418
    %v420 = vlaneseq
    %v421 = vshrl.u32 %v420, 7
    %v422 = vsub.s32 1, %v421
    %v423 = vrot.slane %v34, %v422
    %425 = vbcast.lane.b32.xlu0 %v423, 256
    %v426 = vpop.permute.xlu0 %425
    %s428 = sor.u32 256, 8
    %429 = vbcast.lane.b32.xlu0 %v423, %s428
    %v430 = vpop.permute.xlu0 %429
    %v431 = vlaneseq
    %v432 = vshrl.u32 %v431, 7
    %v433 = vsub.s32 2, %v432
    %v434 = vrot.slane %v34, %v433
    %436 = vbcast.lane.b32.xlu0 %v434, 256
    %v437 = vpop.permute.xlu0 %436
    %s439 = sor.u32 256, 8
    %440 = vbcast.lane.b32.xlu0 %v434, %s439
    %v441 = vpop.permute.xlu0 %440
    %v442 = vlaneseq
    %v443 = vshrl.u32 %v442, 7
    %v444 = vsub.s32 3, %v443
    %v445 = vrot.slane %v34, %v444
    %447 = vbcast.lane.b32.xlu0 %v445, 256
    %v448 = vpop.permute.xlu0 %447
    %s450 = sor.u32 256, 8
    %451 = vbcast.lane.b32.xlu0 %v445, %s450
    %v452 = vpop.permute.xlu0 %451
    %v453 = vlaneseq
    %v454 = vshrl.u32 %v453, 7
    %v455 = vsub.s32 4, %v454
    %v456 = vrot.slane %v34, %v455
    %458 = vbcast.lane.b32.xlu0 %v456, 256
    %v459 = vpop.permute.xlu0 %458
    %s461 = sor.u32 256, 8
    %462 = vbcast.lane.b32.xlu0 %v456, %s461
    %v463 = vpop.permute.xlu0 %462
    %v464 = vlaneseq
    %v465 = vshrl.u32 %v464, 7
    %v466 = vsub.s32 5, %v465
    %v467 = vrot.slane %v34, %v466
    %469 = vbcast.lane.b32.xlu0 %v467, 256
    %v470 = vpop.permute.xlu0 %469
    %s472 = sor.u32 256, 8
    %473 = vbcast.lane.b32.xlu0 %v467, %s472
    %v474 = vpop.permute.xlu0 %473
    %v475 = vlaneseq
    %v476 = vshrl.u32 %v475, 7
    %v477 = vsub.s32 6, %v476
    %v478 = vrot.slane %v34, %v477
    %480 = vbcast.lane.b32.xlu0 %v478, 256
    %v481 = vpop.permute.xlu0 %480
    %s483 = sor.u32 256, 8
    %484 = vbcast.lane.b32.xlu0 %v478, %s483
    %v485 = vpop.permute.xlu0 %484
    %v486 = vlaneseq
    %v487 = vshrl.u32 %v486, 7
    %v488 = vsub.s32 7, %v487
    %v489 = vrot.slane %v34, %v488
    %491 = vbcast.lane.b32.xlu0 %v489, 256
    %v492 = vpop.permute.xlu0 %491
    %s494 = sor.u32 256, 8
    %495 = vbcast.lane.b32.xlu0 %v489, %s494
    %v496 = vpop.permute.xlu0 %495
    %v498 = vcombine.high %v34, %v34
    %v500 = vunpack.c.l.s4 1966171168
    %v501 = vunpack.c.0.s8 %v500
    %v502 = vlaneseq
    %v503 = vshrl.u32 %v502, 7
    %v504 = vsub.s32 %v501, %v503
    %v505 = vrot.slane %v34, %v504
    %v507 = vunpack.c.l.s4 1966171168
    %v508 = vunpack.c.0.s8 %v507
    %v509 = vlaneseq
    %v510 = vshrl.u32 %v509, 7
    %v511 = vsub.s32 %v508, %v510
    %v512 = vrot.slane %v498, %v511
    %v513 = vcombine.high %v505, %v505
    %v514 = vcombine.high %v512, %v512
    %v516 = vunpack.c.l.s4 1966171168
    %v517 = vunpack.c.0.s8 %v516
    %v518 = vlaneseq
    %v519 = vshrl.u32 %v518, 7
    %v520 = vsub.s32 %v517, %v519
    %v521 = vrot.slane %v505, %v520
    %v523 = vunpack.c.l.s4 1966171168
    %v524 = vunpack.c.0.s8 %v523
    %v525 = vlaneseq
    %v526 = vshrl.u32 %v525, 7
    %v527 = vsub.s32 %v524, %v526
    %v528 = vrot.slane %v512, %v527
    %v530 = vunpack.c.l.s4 1966171168
    %v531 = vunpack.c.0.s8 %v530
    %v532 = vlaneseq
    %v533 = vshrl.u32 %v532, 7
    %v534 = vsub.s32 %v531, %v533
    %v535 = vrot.slane %v513, %v534
    %v537 = vunpack.c.l.s4 1966171168
    %v538 = vunpack.c.0.s8 %v537
    %v539 = vlaneseq
    %v540 = vshrl.u32 %v539, 7
    %v541 = vsub.s32 %v538, %v540
    %v542 = vrot.slane %v514, %v541
    %v543 = vcombine.high %v521, %v521
    %v544 = vcombine.high %v528, %v528
    %v545 = vcombine.high %v535, %v535
    %v546 = vcombine.high %v542, %v542
    %v547 = vlaneseq
    %v548 = vshrl.u32 %v547, 7
    %v549 = vsub.s32 0, %v548
    %v550 = vrot.slane %v521, %v549
    %v551 = vlaneseq
    %v552 = vshrl.u32 %v551, 7
    %v553 = vsub.s32 0, %v552
    %v554 = vrot.slane %v535, %v553
    %v555 = vlaneseq
    %v556 = vshrl.u32 %v555, 7
    %v557 = vsub.s32 0, %v556
    %v558 = vrot.slane %v543, %v557
    %v559 = vlaneseq
    %v560 = vshrl.u32 %v559, 7
    %v561 = vsub.s32 0, %v560
    %v562 = vrot.slane %v545, %v561
    %v563 = vlaneseq
    %v564 = vshrl.u32 %v563, 7
    %v565 = vsub.s32 0, %v564
    %v566 = vrot.slane %v528, %v565
    %v567 = vlaneseq
    %v568 = vshrl.u32 %v567, 7
    %v569 = vsub.s32 0, %v568
    %v570 = vrot.slane %v542, %v569
    %v571 = vlaneseq
    %v572 = vshrl.u32 %v571, 7
    %v573 = vsub.s32 0, %v572
    %v574 = vrot.slane %v544, %v573
    %v575 = vlaneseq
    %v576 = vshrl.u32 %v575, 7
    %v577 = vsub.s32 0, %v576
    %v578 = vrot.slane %v546, %v577
    %v587 = vsub.f32 %v415, %v550
    %v588 = vsub.f32 %v419, %v550
    %v589 = vsub.f32 %v426, %v554
    %v590 = vsub.f32 %v430, %v554
    %v591 = vsub.f32 %v437, %v558
    %v592 = vsub.f32 %v441, %v558
    %v593 = vsub.f32 %v448, %v562
    %v594 = vsub.f32 %v452, %v562
    %v595 = vsub.f32 %v459, %v566
    %v596 = vsub.f32 %v463, %v566
    %v597 = vsub.f32 %v470, %v570
    %v598 = vsub.f32 %v474, %v570
    %v599 = vsub.f32 %v481, %v574
    %v600 = vsub.f32 %v485, %v574
    %v601 = vsub.f32 %v492, %v578
    %v602 = vsub.f32 %v496, %v578
    %v603 = vmul.f32 %v393, %v587
    %v604 = vmul.f32 %v394, %v588
    %v605 = vmul.f32 %v395, %v589
    %v606 = vmul.f32 %v396, %v590
    %v607 = vmul.f32 %v397, %v591
    %v608 = vmul.f32 %v398, %v592
    %v609 = vmul.f32 %v399, %v593
    %v610 = vmul.f32 %v400, %v594
    %v611 = vmul.f32 %v401, %v595
    %v612 = vmul.f32 %v402, %v596
    %v613 = vmul.f32 %v403, %v597
    %v614 = vmul.f32 %v404, %v598
    %v615 = vmul.f32 %v405, %v599
    %v616 = vmul.f32 %v406, %v600
    %v617 = vmul.f32 %v407, %v601
    %v618 = vmul.f32 %v408, %v602
    %vm619 = vcmp.gt.f32.partialorder %v603, 0.0
    %vm620 = vcmp.gt.f32.partialorder %v604, 0.0
    %vm621 = vcmp.gt.f32.partialorder %v605, 0.0
    %vm622 = vcmp.gt.f32.partialorder %v606, 0.0
    %vm623 = vcmp.gt.f32.partialorder %v607, 0.0
    %vm624 = vcmp.gt.f32.partialorder %v608, 0.0
    %vm625 = vcmp.gt.f32.partialorder %v609, 0.0
    %vm626 = vcmp.gt.f32.partialorder %v610, 0.0
    %vm627 = vcmp.gt.f32.partialorder %v611, 0.0
    %vm628 = vcmp.gt.f32.partialorder %v612, 0.0
    %vm629 = vcmp.gt.f32.partialorder %v613, 0.0
    %vm630 = vcmp.gt.f32.partialorder %v614, 0.0
    %vm631 = vcmp.gt.f32.partialorder %v615, 0.0
    %vm632 = vcmp.gt.f32.partialorder %v616, 0.0
    %vm633 = vcmp.gt.f32.partialorder %v617, 0.0
    %vm634 = vcmp.gt.f32.partialorder %v618, 0.0
    %v635 = vsel %vm619, 1, 0
    %v636 = vsel %vm620, 1, 0
    %v637 = vsel %vm621, 1, 0
    %v638 = vsel %vm622, 1, 0
    %v639 = vsel %vm623, 1, 0
    %v640 = vsel %vm624, 1, 0
    %v641 = vsel %vm625, 1, 0
    %v642 = vsel %vm626, 1, 0
    %v643 = vsel %vm627, 1, 0
    %v644 = vsel %vm628, 1, 0
    %v645 = vsel %vm629, 1, 0
    %v646 = vsel %vm630, 1, 0
    %v647 = vsel %vm631, 1, 0
    %v648 = vsel %vm632, 1, 0
    %v649 = vsel %vm633, 1, 0
    %v650 = vsel %vm634, 1, 0
    %v651 = vcvt.s32.f32 %v635
    %v652 = vcvt.s32.f32 %v636
    %v653 = vcvt.s32.f32 %v637
    %v654 = vcvt.s32.f32 %v638
    %v655 = vcvt.s32.f32 %v639
    %v656 = vcvt.s32.f32 %v640
    %v657 = vcvt.s32.f32 %v641
    %v658 = vcvt.s32.f32 %v642
    %v659 = vcvt.s32.f32 %v643
    %v660 = vcvt.s32.f32 %v644
    %v661 = vcvt.s32.f32 %v645
    %v662 = vcvt.s32.f32 %v646
    %v663 = vcvt.s32.f32 %v647
    %v664 = vcvt.s32.f32 %v648
    %v665 = vcvt.s32.f32 %v649
    %v666 = vcvt.s32.f32 %v650
    %vm667 = vcmp.lt.f32.partialorder %v603, 0.0
    %vm668 = vcmp.lt.f32.partialorder %v604, 0.0
    %vm669 = vcmp.lt.f32.partialorder %v605, 0.0
    %vm670 = vcmp.lt.f32.partialorder %v606, 0.0
    %vm671 = vcmp.lt.f32.partialorder %v607, 0.0
    %vm672 = vcmp.lt.f32.partialorder %v608, 0.0
    %vm673 = vcmp.lt.f32.partialorder %v609, 0.0
    %vm674 = vcmp.lt.f32.partialorder %v610, 0.0
    %vm675 = vcmp.lt.f32.partialorder %v611, 0.0
    %vm676 = vcmp.lt.f32.partialorder %v612, 0.0
    %vm677 = vcmp.lt.f32.partialorder %v613, 0.0
    %vm678 = vcmp.lt.f32.partialorder %v614, 0.0
    %vm679 = vcmp.lt.f32.partialorder %v615, 0.0
    %vm680 = vcmp.lt.f32.partialorder %v616, 0.0
    %vm681 = vcmp.lt.f32.partialorder %v617, 0.0
    %vm682 = vcmp.lt.f32.partialorder %v618, 0.0
    %v683 = vsel %vm667, 1, 0
    %v684 = vsel %vm668, 1, 0
    %v685 = vsel %vm669, 1, 0
    %v686 = vsel %vm670, 1, 0
    %v687 = vsel %vm671, 1, 0
    %v688 = vsel %vm672, 1, 0
    %v689 = vsel %vm673, 1, 0
    %v690 = vsel %vm674, 1, 0
    %v691 = vsel %vm675, 1, 0
    %v692 = vsel %vm676, 1, 0
    %v693 = vsel %vm677, 1, 0
    %v694 = vsel %vm678, 1, 0
    %v695 = vsel %vm679, 1, 0
    %v696 = vsel %vm680, 1, 0
    %v697 = vsel %vm681, 1, 0
    %v698 = vsel %vm682, 1, 0
    %v699 = vcvt.s32.f32 %v683
    %v700 = vcvt.s32.f32 %v684
    %v701 = vcvt.s32.f32 %v685
    %v702 = vcvt.s32.f32 %v686
    %v703 = vcvt.s32.f32 %v687
    %v704 = vcvt.s32.f32 %v688
    %v705 = vcvt.s32.f32 %v689
    %v706 = vcvt.s32.f32 %v690
    %v707 = vcvt.s32.f32 %v691
    %v708 = vcvt.s32.f32 %v692
    %v709 = vcvt.s32.f32 %v693
    %v710 = vcvt.s32.f32 %v694
    %v711 = vcvt.s32.f32 %v695
    %v712 = vcvt.s32.f32 %v696
    %v713 = vcvt.s32.f32 %v697
    %v714 = vcvt.s32.f32 %v698
    %v715 = vsub.f32 %v651, %v699
    %v716 = vsub.f32 %v652, %v700
    %v717 = vsub.f32 %v653, %v701
    %v718 = vsub.f32 %v654, %v702
    %v719 = vsub.f32 %v655, %v703
    %v720 = vsub.f32 %v656, %v704
    %v721 = vsub.f32 %v657, %v705
    %v722 = vsub.f32 %v658, %v706
    %v723 = vsub.f32 %v659, %v707
    %v724 = vsub.f32 %v660, %v708
    %v725 = vsub.f32 %v661, %v709
    %v726 = vsub.f32 %v662, %v710
    %v727 = vsub.f32 %v663, %v711
    %v728 = vsub.f32 %v664, %v712
    %v729 = vsub.f32 %v665, %v713
    %v730 = vsub.f32 %v666, %v714
    %v731 = vsel %vm45, %v715, 0.0
    %732 = vadd.xlane.f32.xlu0 %v731
    %v733 = vpop.xlane.xlu0 %732
    %v734 = vsel %vm45, %v716, 0.0
    %735 = vadd.xlane.f32.xlu0 %v734
    %v736 = vpop.xlane.xlu0 %735
    %v737 = vsel %vm45, %v717, 0.0
    %738 = vadd.xlane.f32.xlu0 %v737
    %v739 = vpop.xlane.xlu0 %738
    %v740 = vsel %vm45, %v718, 0.0
    %741 = vadd.xlane.f32.xlu0 %v740
    %v742 = vpop.xlane.xlu0 %741
    %v743 = vsel %vm45, %v719, 0.0
    %744 = vadd.xlane.f32.xlu0 %v743
    %v745 = vpop.xlane.xlu0 %744
    %v746 = vsel %vm45, %v720, 0.0
    %747 = vadd.xlane.f32.xlu0 %v746
    %v748 = vpop.xlane.xlu0 %747
    %v749 = vsel %vm45, %v721, 0.0
    %750 = vadd.xlane.f32.xlu0 %v749
    %v751 = vpop.xlane.xlu0 %750
    %v752 = vsel %vm45, %v722, 0.0
    %753 = vadd.xlane.f32.xlu0 %v752
    %v754 = vpop.xlane.xlu0 %753
    %v755 = vsel %vm45, %v723, 0.0
    %756 = vadd.xlane.f32.xlu0 %v755
    %v757 = vpop.xlane.xlu0 %756
    %v758 = vsel %vm45, %v724, 0.0
    %759 = vadd.xlane.f32.xlu0 %v758
    %v760 = vpop.xlane.xlu0 %759
    %v761 = vsel %vm45, %v725, 0.0
    %762 = vadd.xlane.f32.xlu0 %v761
    %v763 = vpop.xlane.xlu0 %762
    %v764 = vsel %vm45, %v726, 0.0
    %765 = vadd.xlane.f32.xlu0 %v764
    %v766 = vpop.xlane.xlu0 %765
    %v767 = vsel %vm45, %v727, 0.0
    %768 = vadd.xlane.f32.xlu0 %v767
    %v769 = vpop.xlane.xlu0 %768
    %v770 = vsel %vm45, %v728, 0.0
    %771 = vadd.xlane.f32.xlu0 %v770
    %v772 = vpop.xlane.xlu0 %771
    %v773 = vsel %vm45, %v729, 0.0
    %774 = vadd.xlane.f32.xlu0 %v773
    %v775 = vpop.xlane.xlu0 %774
    %v776 = vsel %vm45, %v730, 0.0
    %777 = vadd.xlane.f32.xlu0 %v776
    %v778 = vpop.xlane.xlu0 %777
    %v795 = vlaneseq
    %v796 = vshrl.u32 %v795, 7
    %v797 = vsub.s32 %v38, %v796
    %v798 = vrot.slane %v733, %v797
    %v799 = vadd.s32 %v38, 4294967288
    %v800 = vlaneseq
    %v801 = vshrl.u32 %v800, 7
    %v802 = vsub.s32 %v799, %v801
    %v803 = vrot.slane %v736, %v802
    %vm804 = vcmask 130112
    %v805 = vsel %vm804, %v803, %v798
    %v806 = vlaneseq
    %v807 = vshrl.u32 %v806, 7
    %v808 = vsub.s32 %v38, %v807
    %v809 = vrot.slane %v739, %v808
    %v810 = vlaneseq
    %v811 = vshrl.u32 %v810, 7
    %v812 = vsub.s32 %v799, %v811
    %v813 = vrot.slane %v742, %v812
    %v814 = vsel %vm804, %v813, %v809
    %v815 = vlaneseq
    %v816 = vshrl.u32 %v815, 7
    %v817 = vsub.s32 %v38, %v816
    %v818 = vrot.slane %v745, %v817
    %v819 = vlaneseq
    %v820 = vshrl.u32 %v819, 7
    %v821 = vsub.s32 %v799, %v820
    %v822 = vrot.slane %v748, %v821
    %v823 = vsel %vm804, %v822, %v818
    %v824 = vlaneseq
    %v825 = vshrl.u32 %v824, 7
    %v826 = vsub.s32 %v38, %v825
    %v827 = vrot.slane %v751, %v826
    %v828 = vlaneseq
    %v829 = vshrl.u32 %v828, 7
    %v830 = vsub.s32 %v799, %v829
    %v831 = vrot.slane %v754, %v830
    %v832 = vsel %vm804, %v831, %v827
    %v833 = vlaneseq
    %v834 = vshrl.u32 %v833, 7
    %v835 = vsub.s32 %v38, %v834
    %v836 = vrot.slane %v757, %v835
    %v837 = vlaneseq
    %v838 = vshrl.u32 %v837, 7
    %v839 = vsub.s32 %v799, %v838
    %v840 = vrot.slane %v760, %v839
    %v841 = vsel %vm804, %v840, %v836
    %v842 = vlaneseq
    %v843 = vshrl.u32 %v842, 7
    %v844 = vsub.s32 %v38, %v843
    %v845 = vrot.slane %v763, %v844
    %v846 = vlaneseq
    %v847 = vshrl.u32 %v846, 7
    %v848 = vsub.s32 %v799, %v847
    %v849 = vrot.slane %v766, %v848
    %v850 = vsel %vm804, %v849, %v845
    %v851 = vlaneseq
    %v852 = vshrl.u32 %v851, 7
    %v853 = vsub.s32 %v38, %v852
    %v854 = vrot.slane %v769, %v853
    %v855 = vlaneseq
    %v856 = vshrl.u32 %v855, 7
    %v857 = vsub.s32 %v799, %v856
    %v858 = vrot.slane %v772, %v857
    %v859 = vsel %vm804, %v858, %v854
    %v860 = vlaneseq
    %v861 = vshrl.u32 %v860, 7
    %v862 = vsub.s32 %v38, %v861
    %v863 = vrot.slane %v775, %v862
    %v864 = vlaneseq
    %v865 = vshrl.u32 %v864, 7
    %v866 = vsub.s32 %v799, %v865
    %v867 = vrot.slane %v778, %v866
    %v868 = vsel %vm804, %v867, %v863
    %vm869 = vcmask 1041409
    %v870 = vsel %vm869, %v814, %v805
    %vm871 = vcmask 1042434
    %v872 = vsel %vm871, %v823, %v870
    %vm873 = vcmask 1043459
    %v874 = vsel %vm873, %v832, %v872
    %vm875 = vcmask 1044484
    %v876 = vsel %vm875, %v841, %v874
    %vm877 = vcmask 1045509
    %v878 = vsel %vm877, %v850, %v876
    %vm879 = vcmask 1046534
    %v880 = vsel %vm879, %v859, %v878
    %vm881 = vcmask 1047559
    %v882 = vsel %vm881, %v868, %v880
    %v884 = vsel %vm45, %v882, 0.0
    %885 = vadd.xlane.f32.xlu0 %v884
    %v886 = vpop.xlane.xlu0 %885
    %vm887 = vcmp.eq.f32.partialorder %v393, 0.0
    %vm888 = vcmp.eq.f32.partialorder %v394, 0.0
    %vm889 = vcmp.eq.f32.partialorder %v395, 0.0
    %vm890 = vcmp.eq.f32.partialorder %v396, 0.0
    %vm891 = vcmp.eq.f32.partialorder %v397, 0.0
    %vm892 = vcmp.eq.f32.partialorder %v398, 0.0
    %vm893 = vcmp.eq.f32.partialorder %v399, 0.0
    %vm894 = vcmp.eq.f32.partialorder %v400, 0.0
    %vm895 = vcmp.eq.f32.partialorder %v401, 0.0
    %vm896 = vcmp.eq.f32.partialorder %v402, 0.0
    %vm897 = vcmp.eq.f32.partialorder %v403, 0.0
    %vm898 = vcmp.eq.f32.partialorder %v404, 0.0
    %vm899 = vcmp.eq.f32.partialorder %v405, 0.0
    %vm900 = vcmp.eq.f32.partialorder %v406, 0.0
    %vm901 = vcmp.eq.f32.partialorder %v407, 0.0
    %vm902 = vcmp.eq.f32.partialorder %v408, 0.0
    %v903 = vsel %vm887, 1, 0
    %v904 = vsel %vm888, 1, 0
    %v905 = vsel %vm889, 1, 0
    %v906 = vsel %vm890, 1, 0
    %v907 = vsel %vm891, 1, 0
    %v908 = vsel %vm892, 1, 0
    %v909 = vsel %vm893, 1, 0
    %v910 = vsel %vm894, 1, 0
    %v911 = vsel %vm895, 1, 0
    %v912 = vsel %vm896, 1, 0
    %v913 = vsel %vm897, 1, 0
    %v914 = vsel %vm898, 1, 0
    %v915 = vsel %vm899, 1, 0
    %v916 = vsel %vm900, 1, 0
    %v917 = vsel %vm901, 1, 0
    %v918 = vsel %vm902, 1, 0
    %v919 = vcvt.s32.f32 %v903
    %v920 = vcvt.s32.f32 %v904
    %v921 = vcvt.s32.f32 %v905
    %v922 = vcvt.s32.f32 %v906
    %v923 = vcvt.s32.f32 %v907
    %v924 = vcvt.s32.f32 %v908
    %v925 = vcvt.s32.f32 %v909
    %v926 = vcvt.s32.f32 %v910
    %v927 = vcvt.s32.f32 %v911
    %v928 = vcvt.s32.f32 %v912
    %v929 = vcvt.s32.f32 %v913
    %v930 = vcvt.s32.f32 %v914
    %v931 = vcvt.s32.f32 %v915
    %v932 = vcvt.s32.f32 %v916
    %v933 = vcvt.s32.f32 %v917
    %v934 = vcvt.s32.f32 %v918
    %v935 = vsel %vm45, %v919, 0.0
    %936 = vadd.xlane.f32.xlu0 %v935
    %v937 = vpop.xlane.xlu0 %936
    %v938 = vsel %vm45, %v920, 0.0
    %939 = vadd.xlane.f32.xlu0 %v938
    %v940 = vpop.xlane.xlu0 %939
    %v941 = vsel %vm45, %v921, 0.0
    %942 = vadd.xlane.f32.xlu0 %v941
    %v943 = vpop.xlane.xlu0 %942
    %v944 = vsel %vm45, %v922, 0.0
    %945 = vadd.xlane.f32.xlu0 %v944
    %v946 = vpop.xlane.xlu0 %945
    %v947 = vsel %vm45, %v923, 0.0
    %948 = vadd.xlane.f32.xlu0 %v947
    %v949 = vpop.xlane.xlu0 %948
    %v950 = vsel %vm45, %v924, 0.0
    %951 = vadd.xlane.f32.xlu0 %v950
    %v952 = vpop.xlane.xlu0 %951
    %v953 = vsel %vm45, %v925, 0.0
    %954 = vadd.xlane.f32.xlu0 %v953
    %v955 = vpop.xlane.xlu0 %954
    %v956 = vsel %vm45, %v926, 0.0
    %957 = vadd.xlane.f32.xlu0 %v956
    %v958 = vpop.xlane.xlu0 %957
    %v959 = vsel %vm45, %v927, 0.0
    %960 = vadd.xlane.f32.xlu0 %v959
    %v961 = vpop.xlane.xlu0 %960
    %v962 = vsel %vm45, %v928, 0.0
    %963 = vadd.xlane.f32.xlu0 %v962
    %v964 = vpop.xlane.xlu0 %963
    %v965 = vsel %vm45, %v929, 0.0
    %966 = vadd.xlane.f32.xlu0 %v965
    %v967 = vpop.xlane.xlu0 %966
    %v968 = vsel %vm45, %v930, 0.0
    %969 = vadd.xlane.f32.xlu0 %v968
    %v970 = vpop.xlane.xlu0 %969
    %v971 = vsel %vm45, %v931, 0.0
    %972 = vadd.xlane.f32.xlu0 %v971
    %v973 = vpop.xlane.xlu0 %972
    %v974 = vsel %vm45, %v932, 0.0
    %975 = vadd.xlane.f32.xlu0 %v974
    %v976 = vpop.xlane.xlu0 %975
    %v977 = vsel %vm45, %v933, 0.0
    %978 = vadd.xlane.f32.xlu0 %v977
    %v979 = vpop.xlane.xlu0 %978
    %v980 = vsel %vm45, %v934, 0.0
    %981 = vadd.xlane.f32.xlu0 %v980
    %v982 = vpop.xlane.xlu0 %981
    %v999 = vlaneseq
    %v1000 = vshrl.u32 %v999, 7
    %v1001 = vsub.s32 %v38, %v1000
    %v1002 = vrot.slane %v937, %v1001
    %v1003 = vlaneseq
    %v1004 = vshrl.u32 %v1003, 7
    %v1005 = vsub.s32 %v799, %v1004
    %v1006 = vrot.slane %v940, %v1005
    %v1007 = vsel %vm804, %v1006, %v1002
    %v1008 = vlaneseq
    %v1009 = vshrl.u32 %v1008, 7
    %v1010 = vsub.s32 %v38, %v1009
    %v1011 = vrot.slane %v943, %v1010
    %v1012 = vlaneseq
    %v1013 = vshrl.u32 %v1012, 7
    %v1014 = vsub.s32 %v799, %v1013
    %v1015 = vrot.slane %v946, %v1014
    %v1016 = vsel %vm804, %v1015, %v1011
    %v1017 = vlaneseq
    %v1018 = vshrl.u32 %v1017, 7
    %v1019 = vsub.s32 %v38, %v1018
    %v1020 = vrot.slane %v949, %v1019
    %v1021 = vlaneseq
    %v1022 = vshrl.u32 %v1021, 7
    %v1023 = vsub.s32 %v799, %v1022
    %v1024 = vrot.slane %v952, %v1023
    %v1025 = vsel %vm804, %v1024, %v1020
    %v1026 = vlaneseq
    %v1027 = vshrl.u32 %v1026, 7
    %v1028 = vsub.s32 %v38, %v1027
    %v1029 = vrot.slane %v955, %v1028
    %v1030 = vlaneseq
    %v1031 = vshrl.u32 %v1030, 7
    %v1032 = vsub.s32 %v799, %v1031
    %v1033 = vrot.slane %v958, %v1032
    %v1034 = vsel %vm804, %v1033, %v1029
    %v1035 = vlaneseq
    %v1036 = vshrl.u32 %v1035, 7
    %v1037 = vsub.s32 %v38, %v1036
    %v1038 = vrot.slane %v961, %v1037
    %v1039 = vlaneseq
    %v1040 = vshrl.u32 %v1039, 7
    %v1041 = vsub.s32 %v799, %v1040
    %v1042 = vrot.slane %v964, %v1041
    %v1043 = vsel %vm804, %v1042, %v1038
    %v1044 = vlaneseq
    %v1045 = vshrl.u32 %v1044, 7
    %v1046 = vsub.s32 %v38, %v1045
    %v1047 = vrot.slane %v967, %v1046
    %v1048 = vlaneseq
    %v1049 = vshrl.u32 %v1048, 7
    %v1050 = vsub.s32 %v799, %v1049
    %v1051 = vrot.slane %v970, %v1050
    %v1052 = vsel %vm804, %v1051, %v1047
    %v1053 = vlaneseq
    %v1054 = vshrl.u32 %v1053, 7
    %v1055 = vsub.s32 %v38, %v1054
    %v1056 = vrot.slane %v973, %v1055
    %v1057 = vlaneseq
    %v1058 = vshrl.u32 %v1057, 7
    %v1059 = vsub.s32 %v799, %v1058
    %v1060 = vrot.slane %v976, %v1059
    %v1061 = vsel %vm804, %v1060, %v1056
    %v1062 = vlaneseq
    %v1063 = vshrl.u32 %v1062, 7
    %v1064 = vsub.s32 %v38, %v1063
    %v1065 = vrot.slane %v979, %v1064
    %v1066 = vlaneseq
    %v1067 = vshrl.u32 %v1066, 7
    %v1068 = vsub.s32 %v799, %v1067
    %v1069 = vrot.slane %v982, %v1068
    %v1070 = vsel %vm804, %v1069, %v1065
    %v1071 = vsel %vm869, %v1016, %v1007
    %v1072 = vsel %vm871, %v1025, %v1071
    %v1073 = vsel %vm873, %v1034, %v1072
    %v1074 = vsel %vm875, %v1043, %v1073
    %v1075 = vsel %vm877, %v1052, %v1074
    %v1076 = vsel %vm879, %v1061, %v1075
    %v1077 = vsel %vm881, %v1070, %v1076
    %v1079 = vsel %vm45, %v1077, 0.0
    %1080 = vadd.xlane.f32.xlu0 %v1079
    %v1081 = vpop.xlane.xlu0 %1080
    %vm1082 = vcmp.eq.f32.partialorder %v587, 0.0
    %vm1083 = vcmp.eq.f32.partialorder %v588, 0.0
    %vm1084 = vcmp.eq.f32.partialorder %v589, 0.0
    %vm1085 = vcmp.eq.f32.partialorder %v590, 0.0
    %vm1086 = vcmp.eq.f32.partialorder %v591, 0.0
    %vm1087 = vcmp.eq.f32.partialorder %v592, 0.0
    %vm1088 = vcmp.eq.f32.partialorder %v593, 0.0
    %vm1089 = vcmp.eq.f32.partialorder %v594, 0.0
    %vm1090 = vcmp.eq.f32.partialorder %v595, 0.0
    %vm1091 = vcmp.eq.f32.partialorder %v596, 0.0
    %vm1092 = vcmp.eq.f32.partialorder %v597, 0.0
    %vm1093 = vcmp.eq.f32.partialorder %v598, 0.0
    %vm1094 = vcmp.eq.f32.partialorder %v599, 0.0
    %vm1095 = vcmp.eq.f32.partialorder %v600, 0.0
    %vm1096 = vcmp.eq.f32.partialorder %v601, 0.0
    %vm1097 = vcmp.eq.f32.partialorder %v602, 0.0
    %v1098 = vsel %vm1082, 1, 0
    %v1099 = vsel %vm1083, 1, 0
    %v1100 = vsel %vm1084, 1, 0
    %v1101 = vsel %vm1085, 1, 0
    %v1102 = vsel %vm1086, 1, 0
    %v1103 = vsel %vm1087, 1, 0
    %v1104 = vsel %vm1088, 1, 0
    %v1105 = vsel %vm1089, 1, 0
    %v1106 = vsel %vm1090, 1, 0
    %v1107 = vsel %vm1091, 1, 0
    %v1108 = vsel %vm1092, 1, 0
    %v1109 = vsel %vm1093, 1, 0
    %v1110 = vsel %vm1094, 1, 0
    %v1111 = vsel %vm1095, 1, 0
    %v1112 = vsel %vm1096, 1, 0
    %v1113 = vsel %vm1097, 1, 0
    %v1114 = vcvt.s32.f32 %v1098
    %v1115 = vcvt.s32.f32 %v1099
    %v1116 = vcvt.s32.f32 %v1100
    %v1117 = vcvt.s32.f32 %v1101
    %v1118 = vcvt.s32.f32 %v1102
    %v1119 = vcvt.s32.f32 %v1103
    %v1120 = vcvt.s32.f32 %v1104
    %v1121 = vcvt.s32.f32 %v1105
    %v1122 = vcvt.s32.f32 %v1106
    %v1123 = vcvt.s32.f32 %v1107
    %v1124 = vcvt.s32.f32 %v1108
    %v1125 = vcvt.s32.f32 %v1109
    %v1126 = vcvt.s32.f32 %v1110
    %v1127 = vcvt.s32.f32 %v1111
    %v1128 = vcvt.s32.f32 %v1112
    %v1129 = vcvt.s32.f32 %v1113
    %v1130 = vsel %vm45, %v1114, 0.0
    %1131 = vadd.xlane.f32.xlu0 %v1130
    %v1132 = vpop.xlane.xlu0 %1131
    %v1133 = vsel %vm45, %v1115, 0.0
    %1134 = vadd.xlane.f32.xlu0 %v1133
    %v1135 = vpop.xlane.xlu0 %1134
    %v1136 = vsel %vm45, %v1116, 0.0
    %1137 = vadd.xlane.f32.xlu0 %v1136
    %v1138 = vpop.xlane.xlu0 %1137
    %v1139 = vsel %vm45, %v1117, 0.0
    %1140 = vadd.xlane.f32.xlu0 %v1139
    %v1141 = vpop.xlane.xlu0 %1140
    %v1142 = vsel %vm45, %v1118, 0.0
    %1143 = vadd.xlane.f32.xlu0 %v1142
    %v1144 = vpop.xlane.xlu0 %1143
    %v1145 = vsel %vm45, %v1119, 0.0
    %1146 = vadd.xlane.f32.xlu0 %v1145
    %v1147 = vpop.xlane.xlu0 %1146
    %v1148 = vsel %vm45, %v1120, 0.0
    %1149 = vadd.xlane.f32.xlu0 %v1148
    %v1150 = vpop.xlane.xlu0 %1149
    %v1151 = vsel %vm45, %v1121, 0.0
    %1152 = vadd.xlane.f32.xlu0 %v1151
    %v1153 = vpop.xlane.xlu0 %1152
    %v1154 = vsel %vm45, %v1122, 0.0
    %1155 = vadd.xlane.f32.xlu0 %v1154
    %v1156 = vpop.xlane.xlu0 %1155
    %v1157 = vsel %vm45, %v1123, 0.0
    %1158 = vadd.xlane.f32.xlu0 %v1157
    %v1159 = vpop.xlane.xlu0 %1158
    %v1160 = vsel %vm45, %v1124, 0.0
    %1161 = vadd.xlane.f32.xlu0 %v1160
    %v1162 = vpop.xlane.xlu0 %1161
    %v1163 = vsel %vm45, %v1125, 0.0
    %1164 = vadd.xlane.f32.xlu0 %v1163
    %v1165 = vpop.xlane.xlu0 %1164
    %v1166 = vsel %vm45, %v1126, 0.0
    %1167 = vadd.xlane.f32.xlu0 %v1166
    %v1168 = vpop.xlane.xlu0 %1167
    %v1169 = vsel %vm45, %v1127, 0.0
    %1170 = vadd.xlane.f32.xlu0 %v1169
    %v1171 = vpop.xlane.xlu0 %1170
    %v1172 = vsel %vm45, %v1128, 0.0
    %1173 = vadd.xlane.f32.xlu0 %v1172
    %v1174 = vpop.xlane.xlu0 %1173
    %v1175 = vsel %vm45, %v1129, 0.0
    %1176 = vadd.xlane.f32.xlu0 %v1175
    %v1177 = vpop.xlane.xlu0 %1176
    %v1194 = vlaneseq
    %v1195 = vshrl.u32 %v1194, 7
    %v1196 = vsub.s32 %v38, %v1195
    %v1197 = vrot.slane %v1132, %v1196
    %v1198 = vlaneseq
    %v1199 = vshrl.u32 %v1198, 7
    %v1200 = vsub.s32 %v799, %v1199
    %v1201 = vrot.slane %v1135, %v1200
    %v1202 = vsel %vm804, %v1201, %v1197
    %v1203 = vlaneseq
    %v1204 = vshrl.u32 %v1203, 7
    %v1205 = vsub.s32 %v38, %v1204
    %v1206 = vrot.slane %v1138, %v1205
    %v1207 = vlaneseq
    %v1208 = vshrl.u32 %v1207, 7
    %v1209 = vsub.s32 %v799, %v1208
    %v1210 = vrot.slane %v1141, %v1209
    %v1211 = vsel %vm804, %v1210, %v1206
    %v1212 = vlaneseq
    %v1213 = vshrl.u32 %v1212, 7
    %v1214 = vsub.s32 %v38, %v1213
    %v1215 = vrot.slane %v1144, %v1214
    %v1216 = vlaneseq
    %v1217 = vshrl.u32 %v1216, 7
    %v1218 = vsub.s32 %v799, %v1217
    %v1219 = vrot.slane %v1147, %v1218
    %v1220 = vsel %vm804, %v1219, %v1215
    %v1221 = vlaneseq
    %v1222 = vshrl.u32 %v1221, 7
    %v1223 = vsub.s32 %v38, %v1222
    %v1224 = vrot.slane %v1150, %v1223
    %v1225 = vlaneseq
    %v1226 = vshrl.u32 %v1225, 7
    %v1227 = vsub.s32 %v799, %v1226
    %v1228 = vrot.slane %v1153, %v1227
    %v1229 = vsel %vm804, %v1228, %v1224
    %v1230 = vlaneseq
    %v1231 = vshrl.u32 %v1230, 7
    %v1232 = vsub.s32 %v38, %v1231
    %v1233 = vrot.slane %v1156, %v1232
    %v1234 = vlaneseq
    %v1235 = vshrl.u32 %v1234, 7
    %v1236 = vsub.s32 %v799, %v1235
    %v1237 = vrot.slane %v1159, %v1236
    %v1238 = vsel %vm804, %v1237, %v1233
    %v1239 = vlaneseq
    %v1240 = vshrl.u32 %v1239, 7
    %v1241 = vsub.s32 %v38, %v1240
    %v1242 = vrot.slane %v1162, %v1241
    %v1243 = vlaneseq
    %v1244 = vshrl.u32 %v1243, 7
    %v1245 = vsub.s32 %v799, %v1244
    %v1246 = vrot.slane %v1165, %v1245
    %v1247 = vsel %vm804, %v1246, %v1242
    %v1248 = vlaneseq
    %v1249 = vshrl.u32 %v1248, 7
    %v1250 = vsub.s32 %v38, %v1249
    %v1251 = vrot.slane %v1168, %v1250
    %v1252 = vlaneseq
    %v1253 = vshrl.u32 %v1252, 7
    %v1254 = vsub.s32 %v799, %v1253
    %v1255 = vrot.slane %v1171, %v1254
    %v1256 = vsel %vm804, %v1255, %v1251
    %v1257 = vlaneseq
    %v1258 = vshrl.u32 %v1257, 7
    %v1259 = vsub.s32 %v38, %v1258
    %v1260 = vrot.slane %v1174, %v1259
    %v1261 = vlaneseq
    %v1262 = vshrl.u32 %v1261, 7
    %v1263 = vsub.s32 %v799, %v1262
    %v1264 = vrot.slane %v1177, %v1263
    %v1265 = vsel %vm804, %v1264, %v1260
    %v1266 = vsel %vm869, %v1211, %v1202
    %v1267 = vsel %vm871, %v1220, %v1266
    %v1268 = vsel %vm873, %v1229, %v1267
    %v1269 = vsel %vm875, %v1238, %v1268
    %v1270 = vsel %vm877, %v1247, %v1269
    %v1271 = vsel %vm879, %v1256, %v1270
    %v1272 = vsel %vm881, %v1265, %v1271
    %v1274 = vsel %vm45, %v1272, 0.0
    %1275 = vadd.xlane.f32.xlu0 %v1274
    %v1276 = vpop.xlane.xlu0 %1275
    %v1277 = vmul.f32 %v886, 0.5
    %v1278 = vsub.f32 %v1081, 16.0
    %v1279 = vmul.f32 %v1278, 0.5
    %v1280 = vsub.f32 %v1276, 16.0
    %v1281 = vmul.f32 %v1280, 0.5
    %v1282 = vsub.f32 120.0, %v1279
    %v1283 = vsub.f32 120.0, %v1281
    %v1284 = vmul.f32 %v1282, %v1283
    %v1285 = vmax.f32 %v1284, 0.0
    %v1286 = vrsqrt.pop %v1285
    %v1287 = vmul.f32 %v1285, %v1286
    %vm1288 = vcmp.eq.f32.partialorder %v1285, inf
    %v1289 = vsel %vm1288, %v1285, %v1287
    %vm1290 = vcmp.eq.f32.partialorder %v1285, 0.0
    %v1291 = vand.u32 %v1285, 2147483648
    %v1292 = vsel %vm1290, %v1291, %v1289
    %v1293 = vmax.f32 %v1292, 1e-12
    %v1294 = vrcp.pop %v1293
    %v1295 = vmul.f32 %v1277, %v1294
    %vm1296 = vcmp.eq.s32.totalorder %v38, 0
    %v1297 = vsel %vm1296, %v62, 0.0
    %vm1298 = vcmp.eq.s32.totalorder %v38, 1
    %v1299 = vsel %vm1298, %v79, %v1297
    %vm1300 = vcmp.eq.s32.totalorder %v38, 2
    %v1301 = vsel %vm1300, %v149, %v1299
    %vm1302 = vcmp.eq.s32.totalorder %v38, 3
    %v1303 = vsel %vm1302, %v155, %v1301
    %vm1304 = vcmp.eq.s32.totalorder %v38, 4
    %v1305 = vsel %vm1304, %v161, %v1303
    %vm1306 = vcmp.eq.s32.totalorder %v38, 5
    %v1307 = vsel %vm1306, %v167, %v1305
    %vm1308 = vcmp.eq.s32.totalorder %v38, 6
    %v1309 = vsel %vm1308, %v1295, %v1307
    %vm1310 = vcmp.eq.s32.totalorder %v38, 7
    %v1311 = vsel %vm1310, %v208, %v1309
    %vm1312 = vcmp.eq.s32.totalorder %v38, 8
    %v1313 = vsel %vm1312, %v214, %v1311
    %1314 = vst [vmem:[%s5] sm:$0xff] %v1313
    // Predicated region
    $region26: #{c2kd_loss.1} parent=1 // pred_check
      _
    $region27: #{c2kd_loss.1} parent=1 // pred_check_branch
      %1316 = sbr.rel (0) target = $region29
    $region28: #{c2kd_loss.1} parent=1 // pred_region
      _
    $region29: #{c2kd_loss.1} parent=1 // pred_fallthru
      _
    // Predicated region
    $region30: #{c2kd_loss.1} parent=1 // pred_check
      _
    $region31: #{c2kd_loss.1} parent=1 // pred_check_branch
      %1318 = sbr.rel (0) target = $region33
    $region32: #{c2kd_loss.1} parent=1 // pred_region
      _
    $region33: #{c2kd_loss.1} parent=1 // pred_fallthru
      _
    %1319 = vsyncpa [#allocation3], 1

</llo_original>
